<compile_context>
chip_gen: v5e
topology: v5e:2x2
jax: 0.10.0
libtpu: 0.0.40
codegen_flags: <defaults>
</compile_context>

<pallas_src>
import functools

import jax
import jax.numpy as jnp
from jax.experimental import pallas as pl
from jax.experimental.pallas import tpu as pltpu

NEG_SLOPE = 0.2  # must stay in [0, 1] for the max() formulation below


def _round_up(x, m):
    return ((x + m - 1) // m) * m


def _leaky_relu(x):
    # One VALU op (max) instead of cmp+select; valid for slopes in [0, 1].
    return jnp.maximum(x, NEG_SLOPE * x)


def discriminator_kernel(x_ref, w1_ref, b1_ref, w2_ref, b2_ref, w3_ref, b3_ref,
                         o_ref):
    # Cast the fp32 activation tile to bf16 on the VPU (hidden under the MXU)
    # instead of paying an extra HBM pass for the cast in the wrapper.
    x = x_ref[...].astype(jnp.bfloat16)

    # Layer 1: (TB, Dp) @ (Dp, 512) on the MXU, bf16 in / fp32 accumulate.
    h1 = jnp.dot(x, w1_ref[...], preferred_element_type=jnp.float32)
    h1 = _leaky_relu(h1 + b1_ref[...])                           # fp32 VPU

    # Layer 2: (TB, 512) @ (512, 256); bf16 only for the MXU operands,
    # bias-add + LeakyReLU stay fp32 (v5e has no bf16 VALU).
    h2 = jnp.dot(h1.astype(jnp.bfloat16), w2_ref[...],
                 preferred_element_type=jnp.float32)
    h2 = _leaky_relu(h2 + b2_ref[...])                           # fp32 VPU

    # Layer 3 (256 -> 1): an N=1 matmul would waste 255/256 MXU columns and
    # pay the MXU result-FIFO drain; do it as a VPU multiply + lane reduce.
    out = jnp.sum(h2 * w3_ref[...], axis=-1, keepdims=True)      # (TB, 1)
    o_ref[...] = out + b3_ref[...]


def prepare_params(params):
    """One-time conversion of fp32 nn.Linear-style params ((in, out) weights,
    (1, out) biases) into the kernel layout: bf16 matmul weights (w1 padded on
    its input dim to a lane multiple), fp32 biases, w3 as a (1, 256) row.
    Call once; reuse across forward calls (discriminator runs every step)."""
    w1, b1, w2, b2, w3, b3 = params
    D = w1.shape[0]
    Dp = _round_up(D, 128)
    w1 = w1.astype(jnp.bfloat16)
    if Dp != D:
        w1 = jnp.pad(w1, ((0, Dp - D), (0, 0)))
    return (
        w1,                                          # (Dp, 512)  bf16
        b1.astype(jnp.float32).reshape(1, -1),       # (1, 512)   fp32
        w2.astype(jnp.bfloat16),                     # (512, 256) bf16
        b2.astype(jnp.float32).reshape(1, -1),       # (1, 256)   fp32
        w3.astype(jnp.float32).reshape(1, -1),       # (1, 256)   fp32 row
        b3.astype(jnp.float32).reshape(1, 1),        # (1, 1)     fp32
    )


def _choose_batch_tiling(B, batch_tile):
    """Pick a batch tile TB (multiple of 16 for bf16 sublane packing) and a
    padded batch Bp = G*TB with G even whenever G > 1 (v7x megacore balance)."""
    B16 = _round_up(B, 16)
    TB = min(_round_up(batch_tile, 16), B16)
    # Prefer >= 2 grid steps so the parallel grid axis feeds both v7x
    # TensorCores, as long as each tile still has at least 16 rows.
    if TB >= B16 and B16 >= 32:
        TB = _round_up(pl.cdiv(B16, 2), 16)
    G = pl.cdiv(B, TB)
    if G > 1 and G % 2:
        G += 1                  # even grid length -> balanced across 2 TCs
    return TB, G * TB, G


@functools.partial(jax.jit, static_argnames=("batch_tile",))
def discriminator_forward(img, prepared_params, *, batch_tile=512):
    """img: (B, 1, H, W) float32. prepared_params: output of prepare_params.
    Returns validity (B, 1) float32."""
    w1, b1, w2, b2, w3_row, b3 = prepared_params
    B = img.shape[0]
    x = img.reshape(B, -1).astype(jnp.float32)  # same semantics as torch .view

    D = x.shape[1]
    Dp, H1 = w1.shape
    H2 = w2.shape[1]

    TB, Bp, G = _choose_batch_tiling(B, batch_tile)

    # Single fp32 pad (only when needed): batch rows to Bp, feature dim to Dp
    # when the flattened image size is not already lane-aligned.
    if Bp != B or Dp != D:
        x = jnp.pad(x, ((0, Bp - B), (0, Dp - D)))

    # Weights/biases stay resident in VMEM: constant index_map, single buffer.
    resident = lambda shape: pl.BlockSpec(shape, lambda i: (0, 0),
                                          pipeline_mode=pl.Buffered(1))

    out = pl.pallas_call(
        discriminator_kernel,
        out_shape=jax.ShapeDtypeStruct((Bp, 1), jnp.float32),
        grid=(G,),
        in_specs=[
            pl.BlockSpec((TB, Dp), lambda i: (i, 0)),   # x: batch-tiled, fp32
            resident((Dp, H1)),                         # w1 (stays in VMEM)
            resident((1, H1)),                          # b1
            resident((H1, H2)),                         # w2
            resident((1, H2)),                          # b2
            resident((1, H2)),                          # w3 as a row
            resident((1, 1)),                           # b3
        ],
        out_specs=pl.BlockSpec((TB, 1), lambda i: (i, 0)),
        compiler_params=pltpu.CompilerParams(
            dimension_semantics=("parallel",)),         # shard tiles over TCs
    )(x, w1, b1, w2, b2, w3_row, b3)

    return out[:B]


def init_params(key, img_size):
    """Deterministic synthetic init (fp32, shapes match the nn.Linear layers,
    stored as (in, out) so y = x @ W + b)."""
    d_in = img_size ** 2
    dims = [(d_in, 512), (512, 256), (256, 1)]
    params = []
    for fan_in, fan_out in dims:
        kw, kb, key = jax.random.split(key, 3)
        bound = 1.0 / jnp.sqrt(fan_in)
        w = jax.random.uniform(kw, (fan_in, fan_out), jnp.float32, -bound, bound)
        b = jax.random.uniform(kb, (1, fan_out), jnp.float32, -bound, bound)
        params += [w, b]
    return params


def reference_forward(img, params):
    """Pure-JAX reference matching the kernel's numerics (bf16 MXU operands,
    fp32 accumulation, fp32 elementwise)."""
    w1, b1, w2, b2, w3, b3 = params
    x = img.reshape(img.shape[0], -1)
    h1 = jnp.dot(x.astype(jnp.bfloat16), w1.astype(jnp.bfloat16),
                 preferred_element_type=jnp.float32) + b1
    h1 = jnp.maximum(h1, NEG_SLOPE * h1)
    h2 = jnp.dot(h1.astype(jnp.bfloat16), w2.astype(jnp.bfloat16),
                 preferred_element_type=jnp.float32) + b2
    h2 = jnp.maximum(h2, NEG_SLOPE * h2)
    return h2 @ w3 + b3


if __name__ == "__main__":
    img_size = 16            # opt.img_size -> flattened D = 256
    batch = 256              # -> two 128-row tiles, even grid, both TCs busy

    key = jax.random.PRNGKey(0)
    k_img, k_params = jax.random.split(key)

    img = jax.random.normal(k_img, (batch, 1, img_size, img_size), jnp.float32)
    params = init_params(k_params, img_size)
    prepared = prepare_params(params)        # one-time weight conversion

    validity = jax.block_until_ready(discriminator_forward(img, prepared))
    ref = reference_forward(img, params)

    assert validity.shape == (batch, 1)
    assert jnp.allclose(validity, ref, atol=2e-3, rtol=2e-3), (
        float(jnp.max(jnp.abs(validity - ref))))

    print("KERNEL_OK")
</pallas_src>

<mosaic_0001>
module attributes {stable_mosaic.version = 11 : i64} {
  func.func @discriminator_kernel(%arg0: i32, %arg1: memref<128x256xf32, #tpu.memory_space<vmem>>, %arg2: memref<256x512xbf16, #tpu.memory_space<vmem>>, %arg3: memref<1x512xf32, #tpu.memory_space<vmem>>, %arg4: memref<512x256xbf16, #tpu.memory_space<vmem>>, %arg5: memref<1x256xf32, #tpu.memory_space<vmem>>, %arg6: memref<1x256xf32, #tpu.memory_space<vmem>>, %arg7: memref<1x1xf32, #tpu.memory_space<vmem>>, %arg8: memref<128x1xf32, #tpu.memory_space<vmem>>) attributes {dimension_semantics = [#tpu.dimension_semantics<parallel>], iteration_bounds = array<i64: 2>, scalar_prefetch = 0 : i64, scratch_operands = 0 : i64, tpu.core_type = #tpu.core_type<tc>, window_params = [{transform_indices = @transform_0, window_bounds = array<i64: 128, 256>}, {pipeline_mode = #tpu.pipeline_mode<synchronous>, transform_indices = @transform_1, window_bounds = array<i64: 256, 512>}, {pipeline_mode = #tpu.pipeline_mode<synchronous>, transform_indices = @transform_2, window_bounds = array<i64: 1, 512>}, {pipeline_mode = #tpu.pipeline_mode<synchronous>, transform_indices = @transform_3, window_bounds = array<i64: 512, 256>}, {pipeline_mode = #tpu.pipeline_mode<synchronous>, transform_indices = @transform_4, window_bounds = array<i64: 1, 256>}, {pipeline_mode = #tpu.pipeline_mode<synchronous>, transform_indices = @transform_5, window_bounds = array<i64: 1, 256>}, {pipeline_mode = #tpu.pipeline_mode<synchronous>, transform_indices = @transform_6, window_bounds = array<i64: 1, 1>}, {transform_indices = @transform_7, window_bounds = array<i64: 128, 1>}]} {
    %c0 = arith.constant 0 : index
    %c0_0 = arith.constant 0 : index
    %0 = vector.load %arg1[%c0, %c0_0] : memref<128x256xf32, #tpu.memory_space<vmem>>, vector<128x256xf32>
    %1 = arith.truncf %0 : vector<128x256xf32> to vector<128x256xbf16>
    %c0_1 = arith.constant 0 : index
    %c0_2 = arith.constant 0 : index
    %2 = vector.load %arg2[%c0_1, %c0_2] : memref<256x512xbf16, #tpu.memory_space<vmem>>, vector<256x512xbf16>
    %cst = arith.constant dense<0.000000e+00> : vector<128x512xf32>
    %3 = tpu.matmul %1, %2, %cst {dimension_numbers = #tpu.dot_dimension_numbers<[1], [0], [0], [1], [0, 0, 1, 1], [], []>} : vector<128x256xbf16>, vector<256x512xbf16>, vector<128x512xf32> -> vector<128x512xf32>
    %c0_3 = arith.constant 0 : index
    %c0_4 = arith.constant 0 : index
    %4 = vector.load %arg3[%c0_3, %c0_4] : memref<1x512xf32, #tpu.memory_space<vmem>>, vector<1x512xf32>
    %5 = vector.broadcast %4 : vector<1x512xf32> to vector<128x512xf32>
    %6 = arith.addf %3, %5 : vector<128x512xf32>
    %cst_5 = arith.constant 2.000000e-01 : f32
    %7 = vector.broadcast %cst_5 : f32 to vector<128x512xf32>
    %8 = arith.mulf %7, %6 : vector<128x512xf32>
    %9 = arith.maximumf %6, %8 : vector<128x512xf32>
    %10 = arith.truncf %9 : vector<128x512xf32> to vector<128x512xbf16>
    %c0_6 = arith.constant 0 : index
    %c0_7 = arith.constant 0 : index
    %11 = vector.load %arg4[%c0_6, %c0_7] : memref<512x256xbf16, #tpu.memory_space<vmem>>, vector<512x256xbf16>
    %cst_8 = arith.constant dense<0.000000e+00> : vector<128x256xf32>
    %12 = tpu.matmul %10, %11, %cst_8 {dimension_numbers = #tpu.dot_dimension_numbers<[1], [0], [0], [1], [0, 0, 1, 1], [], []>} : vector<128x512xbf16>, vector<512x256xbf16>, vector<128x256xf32> -> vector<128x256xf32>
    %c0_9 = arith.constant 0 : index
    %c0_10 = arith.constant 0 : index
    %13 = vector.load %arg5[%c0_9, %c0_10] : memref<1x256xf32, #tpu.memory_space<vmem>>, vector<1x256xf32>
    %14 = vector.broadcast %13 : vector<1x256xf32> to vector<128x256xf32>
    %15 = arith.addf %12, %14 : vector<128x256xf32>
    %cst_11 = arith.constant 2.000000e-01 : f32
    %16 = vector.broadcast %cst_11 : f32 to vector<128x256xf32>
    %17 = arith.mulf %16, %15 : vector<128x256xf32>
    %18 = arith.maximumf %15, %17 : vector<128x256xf32>
    %c0_12 = arith.constant 0 : index
    %c0_13 = arith.constant 0 : index
    %19 = vector.load %arg6[%c0_12, %c0_13] : memref<1x256xf32, #tpu.memory_space<vmem>>, vector<1x256xf32>
    %20 = vector.broadcast %19 : vector<1x256xf32> to vector<128x256xf32>
    %21 = arith.mulf %18, %20 : vector<128x256xf32>
    %cst_14 = arith.constant dense<0.000000e+00> : vector<128xf32>
    %22 = vector.multi_reduction <add>, %21, %cst_14 [1] : vector<128x256xf32> to vector<128xf32>
    %23 = vector.shape_cast %22 : vector<128xf32> to vector<128x1xf32>
    %c0_15 = arith.constant 0 : index
    %c0_16 = arith.constant 0 : index
    %24 = vector.load %arg7[%c0_15, %c0_16] : memref<1x1xf32, #tpu.memory_space<vmem>>, vector<1x1xf32>
    %25 = vector.broadcast %24 : vector<1x1xf32> to vector<128x1xf32>
    %26 = arith.addf %23, %25 : vector<128x1xf32>
    %c0_17 = arith.constant 0 : index
    %c0_18 = arith.constant 0 : index
    %27 = vector.load %arg8[%c0_17, %c0_18] : memref<128x1xf32, #tpu.memory_space<vmem>>, vector<128x1xf32>
    tpu.vector_store %arg8[%c0_17, %c0_18], %26 {strides = array<i32>} : memref<128x1xf32, #tpu.memory_space<vmem>>, vector<128x1xf32>,
    return
  }
  func.func @transform_0(%arg0: i32) -> (i32, i32) {
    %c0_i32 = arith.constant 0 : i32
    %c0_i32_0 = arith.constant 0 : i32
    return %arg0, %c0_i32 : i32, i32
  }
  func.func @transform_1(%arg0: i32) -> (i32, i32) {
    %c0_i32 = arith.constant 0 : i32
    %c0_i32_0 = arith.constant 0 : i32
    %c0_i32_1 = arith.constant 0 : i32
    return %c0_i32, %c0_i32_0 : i32, i32
  }
  func.func @transform_2(%arg0: i32) -> (i32, i32) {
    %c0_i32 = arith.constant 0 : i32
    %c0_i32_0 = arith.constant 0 : i32
    %c0_i32_1 = arith.constant 0 : i32
    return %c0_i32, %c0_i32_0 : i32, i32
  }
  func.func @transform_3(%arg0: i32) -> (i32, i32) {
    %c0_i32 = arith.constant 0 : i32
    %c0_i32_0 = arith.constant 0 : i32
    %c0_i32_1 = arith.constant 0 : i32
    return %c0_i32, %c0_i32_0 : i32, i32
  }
  func.func @transform_4(%arg0: i32) -> (i32, i32) {
    %c0_i32 = arith.constant 0 : i32
    %c0_i32_0 = arith.constant 0 : i32
    %c0_i32_1 = arith.constant 0 : i32
    return %c0_i32, %c0_i32_0 : i32, i32
  }
  func.func @transform_5(%arg0: i32) -> (i32, i32) {
    %c0_i32 = arith.constant 0 : i32
    %c0_i32_0 = arith.constant 0 : i32
    %c0_i32_1 = arith.constant 0 : i32
    return %c0_i32, %c0_i32_0 : i32, i32
  }
  func.func @transform_6(%arg0: i32) -> (i32, i32) {
    %c0_i32 = arith.constant 0 : i32
    %c0_i32_0 = arith.constant 0 : i32
    %c0_i32_1 = arith.constant 0 : i32
    return %c0_i32, %c0_i32_0 : i32, i32
  }
  func.func @transform_7(%arg0: i32) -> (i32, i32) {
    %c0_i32 = arith.constant 0 : i32
    %c0_i32_0 = arith.constant 0 : i32
    return %arg0, %c0_i32 : i32, i32
  }
}

</mosaic_0001>

<llo_original>
// kernel: discriminator_forward.1
$region0: #{discriminator_forward.1}
  #allocation0 [shape = 'u32[]', space=smem, size = 0x4, offset = 0x4, fixed_abs, tag = 'smem constant byte address 0x4 - core index']
  #allocation1 [shape = 'u32[72,128]{1,0:T(1,128)}', space=vmem, size = 0x9000, scoped, tag = 'internal scratch']
  #allocation2 [shape = 'f32[1,1]{1,0:T(1,128)S(1)}', space=vmem, size = 0x200, scoped, tag = 'scoped memory for discriminator_forward.1']
  %s0 = inlined_call_operand.vmem [shape: f32[256,256], index: 0, kind: input, shape index: {}]
  %s1 = inlined_call_operand.vmem [shape: bf16[256,512], index: 1, kind: input, shape index: {}]
  %s2 = inlined_call_operand.hbm [shape: f32[1,512], index: 2, kind: input, shape index: {}]
  %s3 = inlined_call_operand.vmem [shape: bf16[512,256], index: 3, kind: input, shape index: {}]
  %s4 = inlined_call_operand.hbm [shape: f32[1,256], index: 4, kind: input, shape index: {}]
  %s5 = inlined_call_operand.hbm [shape: f32[1,256], index: 5, kind: input, shape index: {}]
  %s6 = inlined_call_operand.<no memory space> [shape: f32[1,1], index: 6, kind: input, shape index: {}]
  %s7 = inlined_call_operand.vmem [shape: f32[256,1], index: 7, kind: output, shape index: {}]
  %s8 = sld [smem:[#allocation0]]
  $region73: #{discriminator_forward.1} parent=0
    _
  %s10 = ssub.s32 1, %s8
  %s11 = scalar_select 0, %s10, %s8
  %v12 = vstv %s6
  %13 = vst [vmem:[#allocation2] sm:$0x1] %v12
  $region1: #{discriminator_forward.1} parent=0
    #allocation3 [shape = 'u8[2048]{0}', space=vmem, size = 0x800, scoped, tag = 'input window, operand 2, single buffered']
    #allocation4 [shape = 's32[2]{0}', space=sflag, size = 0x8, scoped, tag = 'scoped memory for discriminator_forward.1']
    #allocation5 [shape = 'u8[1024]{0}', space=vmem, size = 0x400, scoped, tag = 'input window, operand 4, single buffered']
    #allocation6 [shape = 's32[1]{0}', space=sflag, size = 0x4, scoped, tag = 'scoped memory for discriminator_forward.1']
    #allocation7 [shape = 'u8[1024]{0}', space=vmem, size = 0x400, scoped, tag = 'input window, operand 5, single buffered']
    %14 = vsyncpa [#allocation4], 0
    %15 = vsyncpa [#allocation6], 0
    loop: start=0, step=1, limit=4
    $region2: #{discriminator_forward.1} parent=1 // loop_pre_header
      _
    $region3: #{discriminator_forward.1} parent=1 // loop_header
      %s17 = sphi 0, %s21
      %p18 = scmp.ge.s32.totalorder %s17, 4
      %s27 = sphi 0, %s29
      %s30 = sphi 0, %s27
      %s31 = sphi 0, %s30
      %s47 = sphi 0, %s31
      %s51 = sphi 0, %s51
      %s53 = sphi 0, %s51
      %s54 = sphi 0, %s53
      %s68 = sphi 0, %s54
      %s72 = sphi 0, %s72
      %s74 = sphi 0, %s72
      %s75 = sphi 0, %s74
      %s89 = sphi 0, %s75
      %s93 = sphi 0, %s93
      %s95 = sphi 0, %s93
      %s96 = sphi 0, %s95
      %s110 = sphi 0, %s96
      %s114 = sphi 0, %s114
      %s116 = sphi 0, %s114
      %s117 = sphi 0, %s116
      %s131 = sphi 0, %s117
      %s135 = sphi 0, %s135
      %s137 = sphi 0, %s135
      %s138 = sphi 0, %s137
      %s152 = sphi 0, %s138
      %s156 = sphi 0, %s156
      %s158 = sphi 0, %s156
      %s159 = sphi 0, %s158
      %s173 = sphi 0, %s159
      %s179 = sphi 0, %s181
      %s182 = sphi 0, %s179
      %s183 = sphi 0, %s182
      %s199 = sphi 0, %s183
    $region4: #{discriminator_forward.1} parent=1 // loop_header_branch
      %20 = sbr.rel (%p18) target = $region8
    $region5: #{discriminator_forward.1} parent=1 // loop_body
      %s22 = ssub.s32 %s17, 1
      %s23 = ssub.s32 %s17, 2
      %s24 = sadd.s32 %s17, 1
      %s25 = ssub.s32 %s17, %s24
      %p26 = scmp.eq.s32.totalorder %s25, 0
      %s28 = sadd.s32 %s27, 1
      %s29 = scalar_select %p26, %s27, %s28
      %p32 = pneg %p26
      %p33 = scmp.eq.s32.totalorder %s17, 1
      %p34 = por %p32, %p33
      %p35 = scmp.ne.s32.totalorder %s27, %s30
      %p36 = scmp.eq.s32.totalorder %s17, 0
      %p37 = por %p35, %p36
      %p38 = scmp.ne.s32.totalorder %s27, %s30
      %p39 = scmp.eq.s32.totalorder %s22, 1
      %p40 = por %p38, %p39
      %p41 = scmp.ne.s32.totalorder %s30, %s31
      %p42 = scmp.eq.s32.totalorder %s22, 0
      %p43 = por %p41, %p42
      %p44 = scmp.ne.s32.totalorder %s30, %s31
      %p45 = scmp.eq.s32.totalorder %s23, 1
      %p46 = por %p44, %p45
      %p48 = scmp.ne.s32.totalorder %s31, %s47
      %p49 = scmp.eq.s32.totalorder %s23, 0
      %p50 = por %p48, %p49
      %s52 = sadd.s32 %s51, 1
      %p55 = scmp.eq.s32.totalorder %s17, 1
      %p56 = scmp.ne.s32.totalorder %s51, %s53
      %p57 = scmp.eq.s32.totalorder %s17, 0
      %p58 = por %p56, %p57
      %p59 = scmp.ne.s32.totalorder %s51, %s53
      %p60 = scmp.eq.s32.totalorder %s22, 1
      %p61 = por %p59, %p60
      %p62 = scmp.ne.s32.totalorder %s53, %s54
      %p63 = scmp.eq.s32.totalorder %s22, 0
      %p64 = por %p62, %p63
      %p65 = scmp.ne.s32.totalorder %s53, %s54
      %p66 = scmp.eq.s32.totalorder %s23, 1
      %p67 = por %p65, %p66
      %p69 = scmp.ne.s32.totalorder %s54, %s68
      %p70 = scmp.eq.s32.totalorder %s23, 0
      %p71 = por %p69, %p70
      %s73 = sadd.s32 %s72, 1
      %p76 = scmp.eq.s32.totalorder %s17, 1
      %p77 = scmp.ne.s32.totalorder %s72, %s74
      %p78 = scmp.eq.s32.totalorder %s17, 0
      %p79 = por %p77, %p78
      %p80 = scmp.ne.s32.totalorder %s72, %s74
      %p81 = scmp.eq.s32.totalorder %s22, 1
      %p82 = por %p80, %p81
      %p83 = scmp.ne.s32.totalorder %s74, %s75
      %p84 = scmp.eq.s32.totalorder %s22, 0
      %p85 = por %p83, %p84
      %p86 = scmp.ne.s32.totalorder %s74, %s75
      %p87 = scmp.eq.s32.totalorder %s23, 1
      %p88 = por %p86, %p87
      %p90 = scmp.ne.s32.totalorder %s75, %s89
      %p91 = scmp.eq.s32.totalorder %s23, 0
      %p92 = por %p90, %p91
      %s94 = sadd.s32 %s93, 1
      %p97 = scmp.eq.s32.totalorder %s17, 1
      %p98 = scmp.ne.s32.totalorder %s93, %s95
      %p99 = scmp.eq.s32.totalorder %s17, 0
      %p100 = por %p98, %p99
      %p101 = scmp.ne.s32.totalorder %s93, %s95
      %p102 = scmp.eq.s32.totalorder %s22, 1
      %p103 = por %p101, %p102
      %p104 = scmp.ne.s32.totalorder %s95, %s96
      %p105 = scmp.eq.s32.totalorder %s22, 0
      %p106 = por %p104, %p105
      %p107 = scmp.ne.s32.totalorder %s95, %s96
      %p108 = scmp.eq.s32.totalorder %s23, 1
      %p109 = por %p107, %p108
      %p111 = scmp.ne.s32.totalorder %s96, %s110
      %p112 = scmp.eq.s32.totalorder %s23, 0
      %p113 = por %p111, %p112
      %s115 = sadd.s32 %s114, 1
      %p118 = scmp.eq.s32.totalorder %s17, 1
      %p119 = scmp.ne.s32.totalorder %s114, %s116
      %p120 = scmp.eq.s32.totalorder %s17, 0
      %p121 = por %p119, %p120
      %p122 = scmp.ne.s32.totalorder %s114, %s116
      %p123 = scmp.eq.s32.totalorder %s22, 1
      %p124 = por %p122, %p123
      %p125 = scmp.ne.s32.totalorder %s116, %s117
      %p126 = scmp.eq.s32.totalorder %s22, 0
      %p127 = por %p125, %p126
      %p128 = scmp.ne.s32.totalorder %s116, %s117
      %p129 = scmp.eq.s32.totalorder %s23, 1
      %p130 = por %p128, %p129
      %p132 = scmp.ne.s32.totalorder %s117, %s131
      %p133 = scmp.eq.s32.totalorder %s23, 0
      %p134 = por %p132, %p133
      %s136 = sadd.s32 %s135, 1
      %p139 = scmp.eq.s32.totalorder %s17, 1
      %p140 = scmp.ne.s32.totalorder %s135, %s137
      %p141 = scmp.eq.s32.totalorder %s17, 0
      %p142 = por %p140, %p141
      %p143 = scmp.ne.s32.totalorder %s135, %s137
      %p144 = scmp.eq.s32.totalorder %s22, 1
      %p145 = por %p143, %p144
      %p146 = scmp.ne.s32.totalorder %s137, %s138
      %p147 = scmp.eq.s32.totalorder %s22, 0
      %p148 = por %p146, %p147
      %p149 = scmp.ne.s32.totalorder %s137, %s138
      %p150 = scmp.eq.s32.totalorder %s23, 1
      %p151 = por %p149, %p150
      %p153 = scmp.ne.s32.totalorder %s138, %s152
      %p154 = scmp.eq.s32.totalorder %s23, 0
      %p155 = por %p153, %p154
      %s157 = sadd.s32 %s156, 1
      %p160 = scmp.eq.s32.totalorder %s17, 1
      %p161 = scmp.ne.s32.totalorder %s156, %s158
      %p162 = scmp.eq.s32.totalorder %s17, 0
      %p163 = por %p161, %p162
      %p164 = scmp.ne.s32.totalorder %s156, %s158
      %p165 = scmp.eq.s32.totalorder %s22, 1
      %p166 = por %p164, %p165
      %p167 = scmp.ne.s32.totalorder %s158, %s159
      %p168 = scmp.eq.s32.totalorder %s22, 0
      %p169 = por %p167, %p168
      %p170 = scmp.ne.s32.totalorder %s158, %s159
      %p171 = scmp.eq.s32.totalorder %s23, 1
      %p172 = por %p170, %p171
      %p174 = scmp.ne.s32.totalorder %s159, %s173
      %p175 = scmp.eq.s32.totalorder %s23, 0
      %p176 = por %p174, %p175
      %s177 = ssub.s32 %s17, %s24
      %p178 = scmp.eq.s32.totalorder %s177, 0
      %s180 = sadd.s32 %s179, 1
      %s181 = scalar_select %p178, %s179, %s180
      %p184 = pneg %p178
      %p185 = scmp.eq.s32.totalorder %s17, 1
      %p186 = por %p184, %p185
      %p187 = scmp.ne.s32.totalorder %s179, %s182
      %p188 = scmp.eq.s32.totalorder %s17, 0
      %p189 = por %p187, %p188
      %p190 = scmp.ne.s32.totalorder %s179, %s182
      %p191 = scmp.eq.s32.totalorder %s22, 1
      %p192 = por %p190, %p191
      %p193 = scmp.ne.s32.totalorder %s182, %s183
      %p194 = scmp.eq.s32.totalorder %s22, 0
      %p195 = por %p193, %p194
      %p196 = scmp.ne.s32.totalorder %s182, %s183
      %p197 = scmp.eq.s32.totalorder %s23, 1
      %p198 = por %p196, %p197
      %p200 = scmp.ne.s32.totalorder %s183, %s199
      %p201 = scmp.eq.s32.totalorder %s23, 0
      %p202 = por %p200, %p201
      %p203 = scmp.le.s32.totalorder 1, %s17
      %p204 = scmp.lt.s32.totalorder %s17, 3
      %p205 = pnand %p203, %p204
      %p206 = pneg %p205
      // Predicated region
      $region9: #{discriminator_forward.1} parent=5 // pred_check
        _
      $region10: #{discriminator_forward.1} parent=5 // pred_check_branch
        %208 = sbr.rel (%p205) target = $region12
      $region11: #{discriminator_forward.1} parent=5 // pred_region
        %s209 = ssub.s32 %s17, 1
        // Predicated region
        $region13: #{discriminator_forward.1} parent=11 // pred_check
          %p210 = pneg %p64
        $region14: #{discriminator_forward.1} parent=11 // pred_check_branch
          %212 = sbr.rel (%p210) target = $region16
        $region15: #{discriminator_forward.1} parent=11 // pred_region
          _
        $region16: #{discriminator_forward.1} parent=11 // pred_fallthru
          _
        // Predicated region
        $region17: #{discriminator_forward.1} parent=11 // pred_check
          %p213 = pneg %p85
        $region18: #{discriminator_forward.1} parent=11 // pred_check_branch
          %215 = sbr.rel (%p213) target = $region20
        $region19: #{discriminator_forward.1} parent=11 // pred_region
          %217 = vsyncadd [#allocation4], 0
          %s219 = sshll.u32 %s2, 4
          %s220 = int_to_ptr.hbm [resolvable:$true] %s219
          %s221 = sshll.u32 [#allocation3], 4
          %s222 = int_to_ptr.vmem [resolvable:$true] %s221
          %224 = dma.hbm_to_vmem [thread:$0]  %s220, 64, %s222, [#allocation4]
        $region20: #{discriminator_forward.1} parent=11 // pred_fallthru
          _
        // Predicated region
        $region21: #{discriminator_forward.1} parent=11 // pred_check
          %p225 = pneg %p106
        $region22: #{discriminator_forward.1} parent=11 // pred_check_branch
          %227 = sbr.rel (%p225) target = $region24
        $region23: #{discriminator_forward.1} parent=11 // pred_region
          _
        $region24: #{discriminator_forward.1} parent=11 // pred_fallthru
          _
        // Predicated region
        $region25: #{discriminator_forward.1} parent=11 // pred_check
          %p228 = pneg %p127
        $region26: #{discriminator_forward.1} parent=11 // pred_check_branch
          %230 = sbr.rel (%p228) target = $region28
        $region27: #{discriminator_forward.1} parent=11 // pred_region
          %232 = vsyncadd [#allocation6], 0
          %s234 = sshll.u32 %s4, 4
          %s235 = int_to_ptr.hbm [resolvable:$true] %s234
          %s236 = sshll.u32 [#allocation5], 4
          %s237 = int_to_ptr.vmem [resolvable:$true] %s236
          %239 = dma.hbm_to_vmem [thread:$0]  %s235, 32, %s237, [#allocation6]
        $region28: #{discriminator_forward.1} parent=11 // pred_fallthru
          _
        // Predicated region
        $region29: #{discriminator_forward.1} parent=11 // pred_check
          %p240 = pneg %p148
        $region30: #{discriminator_forward.1} parent=11 // pred_check_branch
          %242 = sbr.rel (%p240) target = $region32
        $region31: #{discriminator_forward.1} parent=11 // pred_region
          %244 = vsyncadd [#allocation6], 0
          %s246 = sshll.u32 %s5, 4
          %s247 = int_to_ptr.hbm [resolvable:$true] %s246
          %s248 = sshll.u32 [#allocation7], 4
          %s249 = int_to_ptr.vmem [resolvable:$true] %s248
          %251 = dma.hbm_to_vmem [thread:$0]  %s247, 32, %s249, [#allocation6]
        $region32: #{discriminator_forward.1} parent=11 // pred_fallthru
          _
        // Predicated region
        $region33: #{discriminator_forward.1} parent=11 // pred_check
          %p252 = pneg %p169
        $region34: #{discriminator_forward.1} parent=11 // pred_check_branch
          %254 = sbr.rel (%p252) target = $region36
        $region35: #{discriminator_forward.1} parent=11 // pred_region
          _
        $region36: #{discriminator_forward.1} parent=11 // pred_fallthru
          _
      $region12: #{discriminator_forward.1} parent=5 // pred_fallthru
        _
      %p255 = scmp.lt.s32.totalorder %s17, 2
      // Predicated region
      $region37: #{discriminator_forward.1} parent=5 // pred_check
        %p256 = pneg %p255
      $region38: #{discriminator_forward.1} parent=5 // pred_check_branch
        %258 = sbr.rel (%p256) target = $region40
      $region39: #{discriminator_forward.1} parent=5 // pred_region
        // Predicated region
        $region41: #{discriminator_forward.1} parent=39 // pred_check
          %p259 = pneg %p37
        $region42: #{discriminator_forward.1} parent=39 // pred_check_branch
          %261 = sbr.rel (%p259) target = $region44
        $region43: #{discriminator_forward.1} parent=39 // pred_region
          %s262 = smul.u32 16, %s17
          %p263 = scmp.lt.s32.totalorder %s262, 31
          %s264 = scalar_select %p263, %s262, 31
          %s265 = smul.addr %s264, 2
          %s266 = smul.addr %s265, 8
          %s267 = scalar_lea.vmem %s0, %s266
          %s268 = smul.u32 16, %s17
        $region44: #{discriminator_forward.1} parent=39 // pred_fallthru
          _
      $region40: #{discriminator_forward.1} parent=5 // pred_fallthru
        _
      %p269 = scmp.le.s32.totalorder 1, %s17
      %p270 = scmp.lt.s32.totalorder %s17, 3
      %p271 = pnand %p269, %p270
      %p272 = pneg %p271
      // Predicated region
      $region45: #{discriminator_forward.1} parent=5 // pred_check
        _
      $region46: #{discriminator_forward.1} parent=5 // pred_check_branch
        %274 = sbr.rel (%p271) target = $region48
      $region47: #{discriminator_forward.1} parent=5 // pred_region
        %s275 = ssub.s32 %s17, 1
        // Predicated region
        $region49: #{discriminator_forward.1} parent=47 // pred_check
          %p276 = pneg %p85
        $region50: #{discriminator_forward.1} parent=47 // pred_check_branch
          %278 = sbr.rel (%p276) target = $region52
        $region51: #{discriminator_forward.1} parent=47 // pred_region
          %280 = dma.done [#allocation4], 64
        $region52: #{discriminator_forward.1} parent=47 // pred_fallthru
          _
        // Predicated region
        $region53: #{discriminator_forward.1} parent=47 // pred_check
          %p281 = pneg %p127
        $region54: #{discriminator_forward.1} parent=47 // pred_check_branch
          %283 = sbr.rel (%p281) target = $region56
        $region55: #{discriminator_forward.1} parent=47 // pred_region
          %285 = dma.done [#allocation6], 32
        $region56: #{discriminator_forward.1} parent=47 // pred_fallthru
          _
        // Predicated region
        $region57: #{discriminator_forward.1} parent=47 // pred_check
          %p286 = pneg %p148
        $region58: #{discriminator_forward.1} parent=47 // pred_check_branch
          %288 = sbr.rel (%p286) target = $region60
        $region59: #{discriminator_forward.1} parent=47 // pred_region
          %290 = dma.done [#allocation6], 32
        $region60: #{discriminator_forward.1} parent=47 // pred_fallthru
          _
        %s291 = smul.u32 16, %s22
        %p292 = scmp.lt.s32.totalorder %s291, 31
        %s293 = scalar_select %p292, %s291, 31
        %s294 = smul.addr %s293, 2
        %s295 = smul.addr %s294, 8
        %s296 = scalar_lea.vmem %s0, %s295
        %p297 = pneg %p43
        %p298 = pneg %p40
        %p299 = pneg %p64
        %p300 = pneg %p61
        %p301 = pneg %p85
        %p302 = pneg %p82
        %p303 = pneg %p106
        %p304 = pneg %p103
        %p305 = pneg %p127
        %p306 = pneg %p124
        %p307 = pneg %p148
        %p308 = pneg %p145
        %p309 = pneg %p169
        %p310 = pneg %p166
        %p311 = pneg %p195
        %p312 = pneg %p192
        %s313 = smul.u32 16, %s22
        %p314 = scmp.lt.s32.totalorder %s313, 31
        %s315 = scalar_select %p314, %s313, 31
        %s316 = smul.addr %s315, 8
        %s317 = scalar_lea.vmem %s7, %s316
        %s318 = smul.u32 16, %s22
        %p319 = scmp.lt.s32.totalorder %s318, 31
        %s320 = scalar_select %p319, %s318, 31
        %s321 = smul.addr %s320, 2
        %s322 = smul.addr %s321, 8
        %s323 = scalar_lea.vmem %s0, %s322
        %s324 = smul.u32 16, %s22
        %s325 = smul.u32 16, %s22
        %p326 = scmp.lt.s32.totalorder %s325, 31
        %s327 = scalar_select %p326, %s325, 31
        %s328 = smul.addr %s327, 8
        %s329 = scalar_lea.vmem %s7, %s328
        %s330 = smul.u32 16, %s22
        %v331 = vld [vmem:[%s323] sm:$0xff]
        %v332 = vld [vmem:[%s323 + $0x8] sm:$0xff]
        %v333 = vld [vmem:[%s323 + $0x10] sm:$0xff]
        %v334 = vld [vmem:[%s323 + $0x18] sm:$0xff]
        %v335 = vld [vmem:[%s323 + $0x20] sm:$0xff]
        %v336 = vld [vmem:[%s323 + $0x28] sm:$0xff]
        %v337 = vld [vmem:[%s323 + $0x30] sm:$0xff]
        %v338 = vld [vmem:[%s323 + $0x38] sm:$0xff]
        %v339 = vld [vmem:[%s323 + $0x40] sm:$0xff]
        %v340 = vld [vmem:[%s323 + $0x48] sm:$0xff]
        %v341 = vld [vmem:[%s323 + $0x50] sm:$0xff]
        %v342 = vld [vmem:[%s323 + $0x58] sm:$0xff]
        %v343 = vld [vmem:[%s323 + $0x60] sm:$0xff]
        %v344 = vld [vmem:[%s323 + $0x68] sm:$0xff]
        %v345 = vld [vmem:[%s323 + $0x70] sm:$0xff]
        %v346 = vld [vmem:[%s323 + $0x78] sm:$0xff]
        %v347 = vld [vmem:[%s323 + $0x80] sm:$0xff]
        %v348 = vld [vmem:[%s323 + $0x88] sm:$0xff]
        %v349 = vld [vmem:[%s323 + $0x90] sm:$0xff]
        %v350 = vld [vmem:[%s323 + $0x98] sm:$0xff]
        %v351 = vld [vmem:[%s323 + $0xa0] sm:$0xff]
        %v352 = vld [vmem:[%s323 + $0xa8] sm:$0xff]
        %v353 = vld [vmem:[%s323 + $0xb0] sm:$0xff]
        %v354 = vld [vmem:[%s323 + $0xb8] sm:$0xff]
        %v355 = vld [vmem:[%s323 + $0xc0] sm:$0xff]
        %v356 = vld [vmem:[%s323 + $0xc8] sm:$0xff]
        %v357 = vld [vmem:[%s323 + $0xd0] sm:$0xff]
        %v358 = vld [vmem:[%s323 + $0xd8] sm:$0xff]
        %v359 = vld [vmem:[%s323 + $0xe0] sm:$0xff]
        %v360 = vld [vmem:[%s323 + $0xe8] sm:$0xff]
        %v361 = vld [vmem:[%s323 + $0xf0] sm:$0xff]
        %v362 = vld [vmem:[%s323 + $0xf8] sm:$0xff]
        %v363 = vpack.c.bf16 %v333, %v331
        %v364 = vpack.c.bf16 %v334, %v332
        %v365 = vpack.c.bf16 %v337, %v335
        %v366 = vpack.c.bf16 %v338, %v336
        %v367 = vpack.c.bf16 %v341, %v339
        %v368 = vpack.c.bf16 %v342, %v340
        %v369 = vpack.c.bf16 %v345, %v343
        %v370 = vpack.c.bf16 %v346, %v344
        %v371 = vpack.c.bf16 %v349, %v347
        %v372 = vpack.c.bf16 %v350, %v348
        %v373 = vpack.c.bf16 %v353, %v351
        %v374 = vpack.c.bf16 %v354, %v352
        %v375 = vpack.c.bf16 %v357, %v355
        %v376 = vpack.c.bf16 %v358, %v356
        %v377 = vpack.c.bf16 %v361, %v359
        %v378 = vpack.c.bf16 %v362, %v360
        %v379 = vld [vmem:[%s1] sm:$0xff]
        %v380 = vld [vmem:[%s1 + $0x8] sm:$0xff]
        %v381 = vld [vmem:[%s1 + $0x10] sm:$0xff]
        %v382 = vld [vmem:[%s1 + $0x18] sm:$0xff]
        %v383 = vld [vmem:[%s1 + $0x20] sm:$0xff]
        %v384 = vld [vmem:[%s1 + $0x28] sm:$0xff]
        %v385 = vld [vmem:[%s1 + $0x30] sm:$0xff]
        %v386 = vld [vmem:[%s1 + $0x38] sm:$0xff]
        %v387 = vld [vmem:[%s1 + $0x40] sm:$0xff]
        %v388 = vld [vmem:[%s1 + $0x48] sm:$0xff]
        %v389 = vld [vmem:[%s1 + $0x50] sm:$0xff]
        %v390 = vld [vmem:[%s1 + $0x58] sm:$0xff]
        %v391 = vld [vmem:[%s1 + $0x60] sm:$0xff]
        %v392 = vld [vmem:[%s1 + $0x68] sm:$0xff]
        %v393 = vld [vmem:[%s1 + $0x70] sm:$0xff]
        %v394 = vld [vmem:[%s1 + $0x78] sm:$0xff]
        %v395 = vld [vmem:[%s1 + $0x80] sm:$0xff]
        %v396 = vld [vmem:[%s1 + $0x88] sm:$0xff]
        %v397 = vld [vmem:[%s1 + $0x90] sm:$0xff]
        %v398 = vld [vmem:[%s1 + $0x98] sm:$0xff]
        %v399 = vld [vmem:[%s1 + $0xa0] sm:$0xff]
        %v400 = vld [vmem:[%s1 + $0xa8] sm:$0xff]
        %v401 = vld [vmem:[%s1 + $0xb0] sm:$0xff]
        %v402 = vld [vmem:[%s1 + $0xb8] sm:$0xff]
        %v403 = vld [vmem:[%s1 + $0xc0] sm:$0xff]
        %v404 = vld [vmem:[%s1 + $0xc8] sm:$0xff]
        %v405 = vld [vmem:[%s1 + $0xd0] sm:$0xff]
        %v406 = vld [vmem:[%s1 + $0xd8] sm:$0xff]
        %v407 = vld [vmem:[%s1 + $0xe0] sm:$0xff]
        %v408 = vld [vmem:[%s1 + $0xe8] sm:$0xff]
        %v409 = vld [vmem:[%s1 + $0xf0] sm:$0xff]
        %v410 = vld [vmem:[%s1 + $0xf8] sm:$0xff]
        %v411 = vld [vmem:[%s1 + $0x100] sm:$0xff]
        %v412 = vld [vmem:[%s1 + $0x108] sm:$0xff]
        %v413 = vld [vmem:[%s1 + $0x110] sm:$0xff]
        %v414 = vld [vmem:[%s1 + $0x118] sm:$0xff]
        %v415 = vld [vmem:[%s1 + $0x120] sm:$0xff]
        %v416 = vld [vmem:[%s1 + $0x128] sm:$0xff]
        %v417 = vld [vmem:[%s1 + $0x130] sm:$0xff]
        %v418 = vld [vmem:[%s1 + $0x138] sm:$0xff]
        %v419 = vld [vmem:[%s1 + $0x140] sm:$0xff]
        %v420 = vld [vmem:[%s1 + $0x148] sm:$0xff]
        %v421 = vld [vmem:[%s1 + $0x150] sm:$0xff]
        %v422 = vld [vmem:[%s1 + $0x158] sm:$0xff]
        %v423 = vld [vmem:[%s1 + $0x160] sm:$0xff]
        %v424 = vld [vmem:[%s1 + $0x168] sm:$0xff]
        %v425 = vld [vmem:[%s1 + $0x170] sm:$0xff]
        %v426 = vld [vmem:[%s1 + $0x178] sm:$0xff]
        %v427 = vld [vmem:[%s1 + $0x180] sm:$0xff]
        %v428 = vld [vmem:[%s1 + $0x188] sm:$0xff]
        %v429 = vld [vmem:[%s1 + $0x190] sm:$0xff]
        %v430 = vld [vmem:[%s1 + $0x198] sm:$0xff]
        %v431 = vld [vmem:[%s1 + $0x1a0] sm:$0xff]
        %v432 = vld [vmem:[%s1 + $0x1a8] sm:$0xff]
        %v433 = vld [vmem:[%s1 + $0x1b0] sm:$0xff]
        %v434 = vld [vmem:[%s1 + $0x1b8] sm:$0xff]
        %v435 = vld [vmem:[%s1 + $0x1c0] sm:$0xff]
        %v436 = vld [vmem:[%s1 + $0x1c8] sm:$0xff]
        %v437 = vld [vmem:[%s1 + $0x1d0] sm:$0xff]
        %v438 = vld [vmem:[%s1 + $0x1d8] sm:$0xff]
        %v439 = vld [vmem:[%s1 + $0x1e0] sm:$0xff]
        %v440 = vld [vmem:[%s1 + $0x1e8] sm:$0xff]
        %v441 = vld [vmem:[%s1 + $0x1f0] sm:$0xff]
        %v442 = vld [vmem:[%s1 + $0x1f8] sm:$0xff]
        %v443 = vld [vmem:[#allocation3] sm:$0xf]
        %v445 = vperm.slane %v443, 0
        %v446 = vperm.slane %v443, 1
        %v447 = vperm.slane %v443, 2
        %v448 = vperm.slane %v443, 3
        %v517 = vunpack.c.l.b16 %v379
        %v518 = vunpack.c.h.b16 %v379
        %v519 = vunpack.c.l.b16 %v380
        %v520 = vunpack.c.h.b16 %v380
        %v521 = vunpack.c.l.b16 %v381
        %v522 = vunpack.c.h.b16 %v381
        %v523 = vunpack.c.l.b16 %v382
        %v524 = vunpack.c.h.b16 %v382
        %v525 = vunpack.c.l.b16 %v383
        %v526 = vunpack.c.h.b16 %v383
        %v527 = vunpack.c.l.b16 %v384
        %v528 = vunpack.c.h.b16 %v384
        %v529 = vunpack.c.l.b16 %v385
        %v530 = vunpack.c.h.b16 %v385
        %v531 = vunpack.c.l.b16 %v386
        %v532 = vunpack.c.h.b16 %v386
        %v533 = vunpack.c.l.b16 %v387
        %v534 = vunpack.c.h.b16 %v387
        %v535 = vunpack.c.l.b16 %v388
        %v536 = vunpack.c.h.b16 %v388
        %v537 = vunpack.c.l.b16 %v389
        %v538 = vunpack.c.h.b16 %v389
        %v539 = vunpack.c.l.b16 %v390
        %v540 = vunpack.c.h.b16 %v390
        %v541 = vunpack.c.l.b16 %v391
        %v542 = vunpack.c.h.b16 %v391
        %v543 = vunpack.c.l.b16 %v392
        %v544 = vunpack.c.h.b16 %v392
        %v545 = vunpack.c.l.b16 %v393
        %v546 = vunpack.c.h.b16 %v393
        %v547 = vunpack.c.l.b16 %v394
        %v548 = vunpack.c.h.b16 %v394
        %v549 = vunpack.c.l.b16 %v395
        %v550 = vunpack.c.h.b16 %v395
        %v551 = vunpack.c.l.b16 %v396
        %v552 = vunpack.c.h.b16 %v396
        %v553 = vunpack.c.l.b16 %v397
        %v554 = vunpack.c.h.b16 %v397
        %v555 = vunpack.c.l.b16 %v398
        %v556 = vunpack.c.h.b16 %v398
        %v557 = vunpack.c.l.b16 %v399
        %v558 = vunpack.c.h.b16 %v399
        %v559 = vunpack.c.l.b16 %v400
        %v560 = vunpack.c.h.b16 %v400
        %v561 = vunpack.c.l.b16 %v401
        %v562 = vunpack.c.h.b16 %v401
        %v563 = vunpack.c.l.b16 %v402
        %v564 = vunpack.c.h.b16 %v402
        %v565 = vunpack.c.l.b16 %v403
        %v566 = vunpack.c.h.b16 %v403
        %v567 = vunpack.c.l.b16 %v404
        %v568 = vunpack.c.h.b16 %v404
        %v569 = vunpack.c.l.b16 %v405
        %v570 = vunpack.c.h.b16 %v405
        %v571 = vunpack.c.l.b16 %v406
        %v572 = vunpack.c.h.b16 %v406
        %v573 = vunpack.c.l.b16 %v407
        %v574 = vunpack.c.h.b16 %v407
        %v575 = vunpack.c.l.b16 %v408
        %v576 = vunpack.c.h.b16 %v408
        %v577 = vunpack.c.l.b16 %v409
        %v578 = vunpack.c.h.b16 %v409
        %v579 = vunpack.c.l.b16 %v410
        %v580 = vunpack.c.h.b16 %v410
        %v581 = vunpack.c.l.b16 %v411
        %v582 = vunpack.c.h.b16 %v411
        %v583 = vunpack.c.l.b16 %v412
        %v584 = vunpack.c.h.b16 %v412
        %v585 = vunpack.c.l.b16 %v413
        %v586 = vunpack.c.h.b16 %v413
        %v587 = vunpack.c.l.b16 %v414
        %v588 = vunpack.c.h.b16 %v414
        %v589 = vunpack.c.l.b16 %v415
        %v590 = vunpack.c.h.b16 %v415
        %v591 = vunpack.c.l.b16 %v416
        %v592 = vunpack.c.h.b16 %v416
        %v593 = vunpack.c.l.b16 %v417
        %v594 = vunpack.c.h.b16 %v417
        %v595 = vunpack.c.l.b16 %v418
        %v596 = vunpack.c.h.b16 %v418
        %v597 = vunpack.c.l.b16 %v419
        %v598 = vunpack.c.h.b16 %v419
        %v599 = vunpack.c.l.b16 %v420
        %v600 = vunpack.c.h.b16 %v420
        %v601 = vunpack.c.l.b16 %v421
        %v602 = vunpack.c.h.b16 %v421
        %v603 = vunpack.c.l.b16 %v422
        %v604 = vunpack.c.h.b16 %v422
        %v605 = vunpack.c.l.b16 %v423
        %v606 = vunpack.c.h.b16 %v423
        %v607 = vunpack.c.l.b16 %v424
        %v608 = vunpack.c.h.b16 %v424
        %v609 = vunpack.c.l.b16 %v425
        %v610 = vunpack.c.h.b16 %v425
        %v611 = vunpack.c.l.b16 %v426
        %v612 = vunpack.c.h.b16 %v426
        %v613 = vunpack.c.l.b16 %v427
        %v614 = vunpack.c.h.b16 %v427
        %v615 = vunpack.c.l.b16 %v428
        %v616 = vunpack.c.h.b16 %v428
        %v617 = vunpack.c.l.b16 %v429
        %v618 = vunpack.c.h.b16 %v429
        %v619 = vunpack.c.l.b16 %v430
        %v620 = vunpack.c.h.b16 %v430
        %v621 = vunpack.c.l.b16 %v431
        %v622 = vunpack.c.h.b16 %v431
        %v623 = vunpack.c.l.b16 %v432
        %v624 = vunpack.c.h.b16 %v432
        %v625 = vunpack.c.l.b16 %v433
        %v626 = vunpack.c.h.b16 %v433
        %v627 = vunpack.c.l.b16 %v434
        %v628 = vunpack.c.h.b16 %v434
        %v629 = vunpack.c.l.b16 %v435
        %v630 = vunpack.c.h.b16 %v435
        %v631 = vunpack.c.l.b16 %v436
        %v632 = vunpack.c.h.b16 %v436
        %v633 = vunpack.c.l.b16 %v437
        %v634 = vunpack.c.h.b16 %v437
        %v635 = vunpack.c.l.b16 %v438
        %v636 = vunpack.c.h.b16 %v438
        %v637 = vunpack.c.l.b16 %v439
        %v638 = vunpack.c.h.b16 %v439
        %v639 = vunpack.c.l.b16 %v440
        %v640 = vunpack.c.h.b16 %v440
        %v641 = vunpack.c.l.b16 %v441
        %v642 = vunpack.c.h.b16 %v441
        %v643 = vunpack.c.l.b16 %v442
        %v644 = vunpack.c.h.b16 %v442
        %v645 = vpack.c.b16 %v521, %v517
        %v646 = vpack.c.b16 %v522, %v518
        %v647 = vpack.c.b16 %v523, %v519
        %v648 = vpack.c.b16 %v524, %v520
        %v649 = vpack.c.b16 %v529, %v525
        %v650 = vpack.c.b16 %v530, %v526
        %v651 = vpack.c.b16 %v531, %v527
        %v652 = vpack.c.b16 %v532, %v528
        %v653 = vpack.c.b16 %v537, %v533
        %v654 = vpack.c.b16 %v538, %v534
        %v655 = vpack.c.b16 %v539, %v535
        %v656 = vpack.c.b16 %v540, %v536
        %v657 = vpack.c.b16 %v545, %v541
        %v658 = vpack.c.b16 %v546, %v542
        %v659 = vpack.c.b16 %v547, %v543
        %v660 = vpack.c.b16 %v548, %v544
        %v661 = vpack.c.b16 %v553, %v549
        %v662 = vpack.c.b16 %v554, %v550
        %v663 = vpack.c.b16 %v555, %v551
        %v664 = vpack.c.b16 %v556, %v552
        %v665 = vpack.c.b16 %v561, %v557
        %v666 = vpack.c.b16 %v562, %v558
        %v667 = vpack.c.b16 %v563, %v559
        %v668 = vpack.c.b16 %v564, %v560
        %v669 = vpack.c.b16 %v569, %v565
        %v670 = vpack.c.b16 %v570, %v566
        %v671 = vpack.c.b16 %v571, %v567
        %v672 = vpack.c.b16 %v572, %v568
        %v673 = vpack.c.b16 %v577, %v573
        %v674 = vpack.c.b16 %v578, %v574
        %v675 = vpack.c.b16 %v579, %v575
        %v676 = vpack.c.b16 %v580, %v576
        %v677 = vpack.c.b16 %v585, %v581
        %v678 = vpack.c.b16 %v586, %v582
        %v679 = vpack.c.b16 %v587, %v583
        %v680 = vpack.c.b16 %v588, %v584
        %v681 = vpack.c.b16 %v593, %v589
        %v682 = vpack.c.b16 %v594, %v590
        %v683 = vpack.c.b16 %v595, %v591
        %v684 = vpack.c.b16 %v596, %v592
        %v685 = vpack.c.b16 %v601, %v597
        %v686 = vpack.c.b16 %v602, %v598
        %v687 = vpack.c.b16 %v603, %v599
        %v688 = vpack.c.b16 %v604, %v600
        %v689 = vpack.c.b16 %v609, %v605
        %v690 = vpack.c.b16 %v610, %v606
        %v691 = vpack.c.b16 %v611, %v607
        %v692 = vpack.c.b16 %v612, %v608
        %v693 = vpack.c.b16 %v617, %v613
        %v694 = vpack.c.b16 %v618, %v614
        %v695 = vpack.c.b16 %v619, %v615
        %v696 = vpack.c.b16 %v620, %v616
        %v697 = vpack.c.b16 %v625, %v621
        %v698 = vpack.c.b16 %v626, %v622
        %v699 = vpack.c.b16 %v627, %v623
        %v700 = vpack.c.b16 %v628, %v624
        %v701 = vpack.c.b16 %v633, %v629
        %v702 = vpack.c.b16 %v634, %v630
        %v703 = vpack.c.b16 %v635, %v631
        %v704 = vpack.c.b16 %v636, %v632
        %v705 = vpack.c.b16 %v641, %v637
        %v706 = vpack.c.b16 %v642, %v638
        %v707 = vpack.c.b16 %v643, %v639
        %v708 = vpack.c.b16 %v644, %v640
        %773 = vmatpush.bf16.msra.mxu0 %v673
        %774 = vmatpush.bf16.msra.mxu0 %v669
        %775 = vmatpush.bf16.msra.mxu0 %v665
        %776 = vmatpush.bf16.msra.mxu0 %v661
        %777 = vmatpush.bf16.msra.mxu0 %v657
        %778 = vmatpush.bf16.msra.mxu0 %v653
        %779 = vmatpush.bf16.msra.mxu0 %v649
        %780 = vmatpush.bf16.msra.mxu0 %v645
        %781 = vmatmul.bf16.gmra.mxu0 %v363
        %v782 = vpop.f32.mrf.mxu0
        %v783 = vadd.f32 %v445, %v782
        %v784 = vpop.f32.mrf.mxu0
        %v785 = vadd.f32 %v445, %v784
        %786 = vmatmul.bf16.gmra.mxu0 %v365
        %v787 = vpop.f32.mrf.mxu0
        %v788 = vadd.f32 %v445, %v787
        %v789 = vpop.f32.mrf.mxu0
        %v790 = vadd.f32 %v445, %v789
        %791 = vmatmul.bf16.gmra.mxu0 %v367
        %v792 = vpop.f32.mrf.mxu0
        %v793 = vadd.f32 %v445, %v792
        %v794 = vpop.f32.mrf.mxu0
        %v795 = vadd.f32 %v445, %v794
        %796 = vmatmul.bf16.gmra.mxu0 %v369
        %v797 = vpop.f32.mrf.mxu0
        %v798 = vadd.f32 %v445, %v797
        %v799 = vpop.f32.mrf.mxu0
        %v800 = vadd.f32 %v445, %v799
        %801 = vmatmul.bf16.gmra.mxu0 %v371
        %v802 = vpop.f32.mrf.mxu0
        %v803 = vadd.f32 %v445, %v802
        %v804 = vpop.f32.mrf.mxu0
        %v805 = vadd.f32 %v445, %v804
        %806 = vmatmul.bf16.gmra.mxu0 %v373
        %v807 = vpop.f32.mrf.mxu0
        %v808 = vadd.f32 %v445, %v807
        %v809 = vpop.f32.mrf.mxu0
        %v810 = vadd.f32 %v445, %v809
        %811 = vmatmul.bf16.gmra.mxu0 %v375
        %v812 = vpop.f32.mrf.mxu0
        %v813 = vadd.f32 %v445, %v812
        %v814 = vpop.f32.mrf.mxu0
        %v815 = vadd.f32 %v445, %v814
        %816 = vmatmul.bf16.gmra.mxu0 %v377
        %v817 = vpop.f32.mrf.mxu0
        %v818 = vadd.f32 %v445, %v817
        %v819 = vpop.f32.mrf.mxu0
        %v820 = vadd.f32 %v445, %v819
        %821 = vdwg.mxu0
        %822 = vmatpush.bf16.msra.mxu0 %v705
        %823 = vmatpush.bf16.msra.mxu0 %v701
        %824 = vmatpush.bf16.msra.mxu0 %v697
        %825 = vmatpush.bf16.msra.mxu0 %v693
        %826 = vmatpush.bf16.msra.mxu0 %v689
        %827 = vmatpush.bf16.msra.mxu0 %v685
        %828 = vmatpush.bf16.msra.mxu0 %v681
        %829 = vmatpush.bf16.msra.mxu0 %v677
        %830 = vmatmul.bf16.gmra.mxu0 %v364
        %v831 = vpop.f32.mrf.mxu0
        %v832 = vadd.f32 %v783, %v831
        %v833 = vpop.f32.mrf.mxu0
        %v834 = vadd.f32 %v785, %v833
        %835 = vmatmul.bf16.gmra.mxu0 %v366
        %v836 = vpop.f32.mrf.mxu0
        %v837 = vadd.f32 %v788, %v836
        %v838 = vpop.f32.mrf.mxu0
        %v839 = vadd.f32 %v790, %v838
        %840 = vmatmul.bf16.gmra.mxu0 %v368
        %v841 = vpop.f32.mrf.mxu0
        %v842 = vadd.f32 %v793, %v841
        %v843 = vpop.f32.mrf.mxu0
        %v844 = vadd.f32 %v795, %v843
        %845 = vmatmul.bf16.gmra.mxu0 %v370
        %v846 = vpop.f32.mrf.mxu0
        %v847 = vadd.f32 %v798, %v846
        %v848 = vpop.f32.mrf.mxu0
        %v849 = vadd.f32 %v800, %v848
        %850 = vmatmul.bf16.gmra.mxu0 %v372
        %v851 = vpop.f32.mrf.mxu0
        %v852 = vadd.f32 %v803, %v851
        %v853 = vpop.f32.mrf.mxu0
        %v854 = vadd.f32 %v805, %v853
        %855 = vmatmul.bf16.gmra.mxu0 %v374
        %v856 = vpop.f32.mrf.mxu0
        %v857 = vadd.f32 %v808, %v856
        %v858 = vpop.f32.mrf.mxu0
        %v859 = vadd.f32 %v810, %v858
        %860 = vmatmul.bf16.gmra.mxu0 %v376
        %v861 = vpop.f32.mrf.mxu0
        %v862 = vadd.f32 %v813, %v861
        %v863 = vpop.f32.mrf.mxu0
        %v864 = vadd.f32 %v815, %v863
        %865 = vmatmul.bf16.gmra.mxu0 %v378
        %v866 = vpop.f32.mrf.mxu0
        %v867 = vadd.f32 %v818, %v866
        %v868 = vpop.f32.mrf.mxu0
        %v869 = vadd.f32 %v820, %v868
        %870 = vdwg.mxu0
        %871 = vmatpush.bf16.msra.mxu0 %v674
        %872 = vmatpush.bf16.msra.mxu0 %v670
        %873 = vmatpush.bf16.msra.mxu0 %v666
        %874 = vmatpush.bf16.msra.mxu0 %v662
        %875 = vmatpush.bf16.msra.mxu0 %v658
        %876 = vmatpush.bf16.msra.mxu0 %v654
        %877 = vmatpush.bf16.msra.mxu0 %v650
        %878 = vmatpush.bf16.msra.mxu0 %v646
        %879 = vmatmul.bf16.gmra.mxu0 %v363
        %v880 = vpop.f32.mrf.mxu0
        %v881 = vadd.f32 %v446, %v880
        %v882 = vpop.f32.mrf.mxu0
        %v883 = vadd.f32 %v446, %v882
        %884 = vmatmul.bf16.gmra.mxu0 %v365
        %v885 = vpop.f32.mrf.mxu0
        %v886 = vadd.f32 %v446, %v885
        %v887 = vpop.f32.mrf.mxu0
        %v888 = vadd.f32 %v446, %v887
        %889 = vmatmul.bf16.gmra.mxu0 %v367
        %v890 = vpop.f32.mrf.mxu0
        %v891 = vadd.f32 %v446, %v890
        %v892 = vpop.f32.mrf.mxu0
        %v893 = vadd.f32 %v446, %v892
        %894 = vmatmul.bf16.gmra.mxu0 %v369
        %v895 = vpop.f32.mrf.mxu0
        %v896 = vadd.f32 %v446, %v895
        %v897 = vpop.f32.mrf.mxu0
        %v898 = vadd.f32 %v446, %v897
        %899 = vmatmul.bf16.gmra.mxu0 %v371
        %v900 = vpop.f32.mrf.mxu0
        %v901 = vadd.f32 %v446, %v900
        %v902 = vpop.f32.mrf.mxu0
        %v903 = vadd.f32 %v446, %v902
        %904 = vmatmul.bf16.gmra.mxu0 %v373
        %v905 = vpop.f32.mrf.mxu0
        %v906 = vadd.f32 %v446, %v905
        %v907 = vpop.f32.mrf.mxu0
        %v908 = vadd.f32 %v446, %v907
        %909 = vmatmul.bf16.gmra.mxu0 %v375
        %v910 = vpop.f32.mrf.mxu0
        %v911 = vadd.f32 %v446, %v910
        %v912 = vpop.f32.mrf.mxu0
        %v913 = vadd.f32 %v446, %v912
        %914 = vmatmul.bf16.gmra.mxu0 %v377
        %v915 = vpop.f32.mrf.mxu0
        %v916 = vadd.f32 %v446, %v915
        %v917 = vpop.f32.mrf.mxu0
        %v918 = vadd.f32 %v446, %v917
        %919 = vdwg.mxu0
        %920 = vmatpush.bf16.msra.mxu0 %v706
        %921 = vmatpush.bf16.msra.mxu0 %v702
        %922 = vmatpush.bf16.msra.mxu0 %v698
        %923 = vmatpush.bf16.msra.mxu0 %v694
        %924 = vmatpush.bf16.msra.mxu0 %v690
        %925 = vmatpush.bf16.msra.mxu0 %v686
        %926 = vmatpush.bf16.msra.mxu0 %v682
        %927 = vmatpush.bf16.msra.mxu0 %v678
        %928 = vmatmul.bf16.gmra.mxu0 %v364
        %v929 = vpop.f32.mrf.mxu0
        %v930 = vadd.f32 %v881, %v929
        %v931 = vpop.f32.mrf.mxu0
        %v932 = vadd.f32 %v883, %v931
        %933 = vmatmul.bf16.gmra.mxu0 %v366
        %v934 = vpop.f32.mrf.mxu0
        %v935 = vadd.f32 %v886, %v934
        %v936 = vpop.f32.mrf.mxu0
        %v937 = vadd.f32 %v888, %v936
        %938 = vmatmul.bf16.gmra.mxu0 %v368
        %v939 = vpop.f32.mrf.mxu0
        %v940 = vadd.f32 %v891, %v939
        %v941 = vpop.f32.mrf.mxu0
        %v942 = vadd.f32 %v893, %v941
        %943 = vmatmul.bf16.gmra.mxu0 %v370
        %v944 = vpop.f32.mrf.mxu0
        %v945 = vadd.f32 %v896, %v944
        %v946 = vpop.f32.mrf.mxu0
        %v947 = vadd.f32 %v898, %v946
        %948 = vmatmul.bf16.gmra.mxu0 %v372
        %v949 = vpop.f32.mrf.mxu0
        %v950 = vadd.f32 %v901, %v949
        %v951 = vpop.f32.mrf.mxu0
        %v952 = vadd.f32 %v903, %v951
        %953 = vmatmul.bf16.gmra.mxu0 %v374
        %v954 = vpop.f32.mrf.mxu0
        %v955 = vadd.f32 %v906, %v954
        %v956 = vpop.f32.mrf.mxu0
        %v957 = vadd.f32 %v908, %v956
        %958 = vmatmul.bf16.gmra.mxu0 %v376
        %v959 = vpop.f32.mrf.mxu0
        %v960 = vadd.f32 %v911, %v959
        %v961 = vpop.f32.mrf.mxu0
        %v962 = vadd.f32 %v913, %v961
        %963 = vmatmul.bf16.gmra.mxu0 %v378
        %v964 = vpop.f32.mrf.mxu0
        %v965 = vadd.f32 %v916, %v964
        %v966 = vpop.f32.mrf.mxu0
        %v967 = vadd.f32 %v918, %v966
        %968 = vdwg.mxu0
        %969 = vmatpush.bf16.msra.mxu0 %v675
        %970 = vmatpush.bf16.msra.mxu0 %v671
        %971 = vmatpush.bf16.msra.mxu0 %v667
        %972 = vmatpush.bf16.msra.mxu0 %v663
        %973 = vmatpush.bf16.msra.mxu0 %v659
        %974 = vmatpush.bf16.msra.mxu0 %v655
        %975 = vmatpush.bf16.msra.mxu0 %v651
        %976 = vmatpush.bf16.msra.mxu0 %v647
        %977 = vmatmul.bf16.gmra.mxu0 %v363
        %v978 = vpop.f32.mrf.mxu0
        %v979 = vadd.f32 %v447, %v978
        %v980 = vpop.f32.mrf.mxu0
        %v981 = vadd.f32 %v447, %v980
        %982 = vmatmul.bf16.gmra.mxu0 %v365
        %v983 = vpop.f32.mrf.mxu0
        %v984 = vadd.f32 %v447, %v983
        %v985 = vpop.f32.mrf.mxu0
        %v986 = vadd.f32 %v447, %v985
        %987 = vmatmul.bf16.gmra.mxu0 %v367
        %v988 = vpop.f32.mrf.mxu0
        %v989 = vadd.f32 %v447, %v988
        %v990 = vpop.f32.mrf.mxu0
        %v991 = vadd.f32 %v447, %v990
        %992 = vmatmul.bf16.gmra.mxu0 %v369
        %v993 = vpop.f32.mrf.mxu0
        %v994 = vadd.f32 %v447, %v993
        %v995 = vpop.f32.mrf.mxu0
        %v996 = vadd.f32 %v447, %v995
        %997 = vmatmul.bf16.gmra.mxu0 %v371
        %v998 = vpop.f32.mrf.mxu0
        %v999 = vadd.f32 %v447, %v998
        %v1000 = vpop.f32.mrf.mxu0
        %v1001 = vadd.f32 %v447, %v1000
        %1002 = vmatmul.bf16.gmra.mxu0 %v373
        %v1003 = vpop.f32.mrf.mxu0
        %v1004 = vadd.f32 %v447, %v1003
        %v1005 = vpop.f32.mrf.mxu0
        %v1006 = vadd.f32 %v447, %v1005
        %1007 = vmatmul.bf16.gmra.mxu0 %v375
        %v1008 = vpop.f32.mrf.mxu0
        %v1009 = vadd.f32 %v447, %v1008
        %v1010 = vpop.f32.mrf.mxu0
        %v1011 = vadd.f32 %v447, %v1010
        %1012 = vmatmul.bf16.gmra.mxu0 %v377
        %v1013 = vpop.f32.mrf.mxu0
        %v1014 = vadd.f32 %v447, %v1013
        %v1015 = vpop.f32.mrf.mxu0
        %v1016 = vadd.f32 %v447, %v1015
        %1017 = vdwg.mxu0
        %1018 = vmatpush.bf16.msra.mxu0 %v707
        %1019 = vmatpush.bf16.msra.mxu0 %v703
        %1020 = vmatpush.bf16.msra.mxu0 %v699
        %1021 = vmatpush.bf16.msra.mxu0 %v695
        %1022 = vmatpush.bf16.msra.mxu0 %v691
        %1023 = vmatpush.bf16.msra.mxu0 %v687
        %1024 = vmatpush.bf16.msra.mxu0 %v683
        %1025 = vmatpush.bf16.msra.mxu0 %v679
        %1026 = vmatmul.bf16.gmra.mxu0 %v364
        %v1027 = vpop.f32.mrf.mxu0
        %v1028 = vadd.f32 %v979, %v1027
        %v1029 = vpop.f32.mrf.mxu0
        %v1030 = vadd.f32 %v981, %v1029
        %1031 = vmatmul.bf16.gmra.mxu0 %v366
        %v1032 = vpop.f32.mrf.mxu0
        %v1033 = vadd.f32 %v984, %v1032
        %v1034 = vpop.f32.mrf.mxu0
        %v1035 = vadd.f32 %v986, %v1034
        %1036 = vmatmul.bf16.gmra.mxu0 %v368
        %v1037 = vpop.f32.mrf.mxu0
        %v1038 = vadd.f32 %v989, %v1037
        %v1039 = vpop.f32.mrf.mxu0
        %v1040 = vadd.f32 %v991, %v1039
        %1041 = vmatmul.bf16.gmra.mxu0 %v370
        %v1042 = vpop.f32.mrf.mxu0
        %v1043 = vadd.f32 %v994, %v1042
        %v1044 = vpop.f32.mrf.mxu0
        %v1045 = vadd.f32 %v996, %v1044
        %1046 = vmatmul.bf16.gmra.mxu0 %v372
        %v1047 = vpop.f32.mrf.mxu0
        %v1048 = vadd.f32 %v999, %v1047
        %v1049 = vpop.f32.mrf.mxu0
        %v1050 = vadd.f32 %v1001, %v1049
        %1051 = vmatmul.bf16.gmra.mxu0 %v374
        %v1052 = vpop.f32.mrf.mxu0
        %v1053 = vadd.f32 %v1004, %v1052
        %v1054 = vpop.f32.mrf.mxu0
        %v1055 = vadd.f32 %v1006, %v1054
        %1056 = vmatmul.bf16.gmra.mxu0 %v376
        %v1057 = vpop.f32.mrf.mxu0
        %v1058 = vadd.f32 %v1009, %v1057
        %v1059 = vpop.f32.mrf.mxu0
        %v1060 = vadd.f32 %v1011, %v1059
        %1061 = vmatmul.bf16.gmra.mxu0 %v378
        %v1062 = vpop.f32.mrf.mxu0
        %v1063 = vadd.f32 %v1014, %v1062
        %v1064 = vpop.f32.mrf.mxu0
        %v1065 = vadd.f32 %v1016, %v1064
        %1066 = vdwg.mxu0
        %1067 = vmatpush.bf16.msra.mxu0 %v676
        %1068 = vmatpush.bf16.msra.mxu0 %v672
        %1069 = vmatpush.bf16.msra.mxu0 %v668
        %1070 = vmatpush.bf16.msra.mxu0 %v664
        %1071 = vmatpush.bf16.msra.mxu0 %v660
        %1072 = vmatpush.bf16.msra.mxu0 %v656
        %1073 = vmatpush.bf16.msra.mxu0 %v652
        %1074 = vmatpush.bf16.msra.mxu0 %v648
        %1075 = vmatmul.bf16.gmra.mxu0 %v363
        %v1076 = vpop.f32.mrf.mxu0
        %v1077 = vadd.f32 %v448, %v1076
        %v1078 = vpop.f32.mrf.mxu0
        %v1079 = vadd.f32 %v448, %v1078
        %1080 = vmatmul.bf16.gmra.mxu0 %v365
        %v1081 = vpop.f32.mrf.mxu0
        %v1082 = vadd.f32 %v448, %v1081
        %v1083 = vpop.f32.mrf.mxu0
        %v1084 = vadd.f32 %v448, %v1083
        %1085 = vmatmul.bf16.gmra.mxu0 %v367
        %v1086 = vpop.f32.mrf.mxu0
        %v1087 = vadd.f32 %v448, %v1086
        %v1088 = vpop.f32.mrf.mxu0
        %v1089 = vadd.f32 %v448, %v1088
        %1090 = vmatmul.bf16.gmra.mxu0 %v369
        %v1091 = vpop.f32.mrf.mxu0
        %v1092 = vadd.f32 %v448, %v1091
        %v1093 = vpop.f32.mrf.mxu0
        %v1094 = vadd.f32 %v448, %v1093
        %1095 = vmatmul.bf16.gmra.mxu0 %v371
        %v1096 = vpop.f32.mrf.mxu0
        %v1097 = vadd.f32 %v448, %v1096
        %v1098 = vpop.f32.mrf.mxu0
        %v1099 = vadd.f32 %v448, %v1098
        %1100 = vmatmul.bf16.gmra.mxu0 %v373
        %v1101 = vpop.f32.mrf.mxu0
        %v1102 = vadd.f32 %v448, %v1101
        %v1103 = vpop.f32.mrf.mxu0
        %v1104 = vadd.f32 %v448, %v1103
        %1105 = vmatmul.bf16.gmra.mxu0 %v375
        %v1106 = vpop.f32.mrf.mxu0
        %v1107 = vadd.f32 %v448, %v1106
        %v1108 = vpop.f32.mrf.mxu0
        %v1109 = vadd.f32 %v448, %v1108
        %1110 = vmatmul.bf16.gmra.mxu0 %v377
        %v1111 = vpop.f32.mrf.mxu0
        %v1112 = vadd.f32 %v448, %v1111
        %v1113 = vpop.f32.mrf.mxu0
        %v1114 = vadd.f32 %v448, %v1113
        %1115 = vdwg.mxu0
        %1116 = vmatpush.bf16.msra.mxu0 %v708
        %1117 = vmatpush.bf16.msra.mxu0 %v704
        %1118 = vmatpush.bf16.msra.mxu0 %v700
        %1119 = vmatpush.bf16.msra.mxu0 %v696
        %1120 = vmatpush.bf16.msra.mxu0 %v692
        %1121 = vmatpush.bf16.msra.mxu0 %v688
        %1122 = vmatpush.bf16.msra.mxu0 %v684
        %1123 = vmatpush.bf16.msra.mxu0 %v680
        %1124 = vmatmul.bf16.gmra.mxu0 %v364
        %v1125 = vpop.f32.mrf.mxu0
        %v1126 = vadd.f32 %v1077, %v1125
        %v1127 = vpop.f32.mrf.mxu0
        %v1128 = vadd.f32 %v1079, %v1127
        %1129 = vmatmul.bf16.gmra.mxu0 %v366
        %v1130 = vpop.f32.mrf.mxu0
        %v1131 = vadd.f32 %v1082, %v1130
        %v1132 = vpop.f32.mrf.mxu0
        %v1133 = vadd.f32 %v1084, %v1132
        %1134 = vmatmul.bf16.gmra.mxu0 %v368
        %v1135 = vpop.f32.mrf.mxu0
        %v1136 = vadd.f32 %v1087, %v1135
        %v1137 = vpop.f32.mrf.mxu0
        %v1138 = vadd.f32 %v1089, %v1137
        %1139 = vmatmul.bf16.gmra.mxu0 %v370
        %v1140 = vpop.f32.mrf.mxu0
        %v1141 = vadd.f32 %v1092, %v1140
        %v1142 = vpop.f32.mrf.mxu0
        %v1143 = vadd.f32 %v1094, %v1142
        %1144 = vmatmul.bf16.gmra.mxu0 %v372
        %v1145 = vpop.f32.mrf.mxu0
        %v1146 = vadd.f32 %v1097, %v1145
        %v1147 = vpop.f32.mrf.mxu0
        %v1148 = vadd.f32 %v1099, %v1147
        %1149 = vmatmul.bf16.gmra.mxu0 %v374
        %v1150 = vpop.f32.mrf.mxu0
        %v1151 = vadd.f32 %v1102, %v1150
        %v1152 = vpop.f32.mrf.mxu0
        %v1153 = vadd.f32 %v1104, %v1152
        %1154 = vmatmul.bf16.gmra.mxu0 %v376
        %v1155 = vpop.f32.mrf.mxu0
        %v1156 = vadd.f32 %v1107, %v1155
        %v1157 = vpop.f32.mrf.mxu0
        %v1158 = vadd.f32 %v1109, %v1157
        %1159 = vmatmul.bf16.gmra.mxu0 %v378
        %v1160 = vpop.f32.mrf.mxu0
        %v1161 = vadd.f32 %v1112, %v1160
        %v1162 = vpop.f32.mrf.mxu0
        %v1163 = vadd.f32 %v1114, %v1162
        %1164 = vdwg.mxu0
        %v1165 = vmul.f32 %v832, 0.2
        %v1166 = vmul.f32 %v930, 0.2
        %v1167 = vmul.f32 %v1028, 0.2
        %v1168 = vmul.f32 %v1126, 0.2
        %v1169 = vmul.f32 %v834, 0.2
        %v1170 = vmul.f32 %v932, 0.2
        %v1171 = vmul.f32 %v1030, 0.2
        %v1172 = vmul.f32 %v1128, 0.2
        %v1173 = vmul.f32 %v837, 0.2
        %v1174 = vmul.f32 %v935, 0.2
        %v1175 = vmul.f32 %v1033, 0.2
        %v1176 = vmul.f32 %v1131, 0.2
        %v1177 = vmul.f32 %v839, 0.2
        %v1178 = vmul.f32 %v937, 0.2
        %v1179 = vmul.f32 %v1035, 0.2
        %v1180 = vmul.f32 %v1133, 0.2
        %v1181 = vmul.f32 %v842, 0.2
        %v1182 = vmul.f32 %v940, 0.2
        %v1183 = vmul.f32 %v1038, 0.2
        %v1184 = vmul.f32 %v1136, 0.2
        %v1185 = vmul.f32 %v844, 0.2
        %v1186 = vmul.f32 %v942, 0.2
        %v1187 = vmul.f32 %v1040, 0.2
        %v1188 = vmul.f32 %v1138, 0.2
        %v1189 = vmul.f32 %v847, 0.2
        %v1190 = vmul.f32 %v945, 0.2
        %v1191 = vmul.f32 %v1043, 0.2
        %v1192 = vmul.f32 %v1141, 0.2
        %v1193 = vmul.f32 %v849, 0.2
        %v1194 = vmul.f32 %v947, 0.2
        %v1195 = vmul.f32 %v1045, 0.2
        %v1196 = vmul.f32 %v1143, 0.2
        %v1197 = vmul.f32 %v852, 0.2
        %v1198 = vmul.f32 %v950, 0.2
        %v1199 = vmul.f32 %v1048, 0.2
        %v1200 = vmul.f32 %v1146, 0.2
        %v1201 = vmul.f32 %v854, 0.2
        %v1202 = vmul.f32 %v952, 0.2
        %v1203 = vmul.f32 %v1050, 0.2
        %v1204 = vmul.f32 %v1148, 0.2
        %v1205 = vmul.f32 %v857, 0.2
        %v1206 = vmul.f32 %v955, 0.2
        %v1207 = vmul.f32 %v1053, 0.2
        %v1208 = vmul.f32 %v1151, 0.2
        %v1209 = vmul.f32 %v859, 0.2
        %v1210 = vmul.f32 %v957, 0.2
        %v1211 = vmul.f32 %v1055, 0.2
        %v1212 = vmul.f32 %v1153, 0.2
        %v1213 = vmul.f32 %v862, 0.2
        %v1214 = vmul.f32 %v960, 0.2
        %v1215 = vmul.f32 %v1058, 0.2
        %v1216 = vmul.f32 %v1156, 0.2
        %v1217 = vmul.f32 %v864, 0.2
        %v1218 = vmul.f32 %v962, 0.2
        %v1219 = vmul.f32 %v1060, 0.2
        %v1220 = vmul.f32 %v1158, 0.2
        %v1221 = vmul.f32 %v867, 0.2
        %v1222 = vmul.f32 %v965, 0.2
        %v1223 = vmul.f32 %v1063, 0.2
        %v1224 = vmul.f32 %v1161, 0.2
        %v1225 = vmul.f32 %v869, 0.2
        %v1226 = vmul.f32 %v967, 0.2
        %v1227 = vmul.f32 %v1065, 0.2
        %v1228 = vmul.f32 %v1163, 0.2
        %v1229 = vmax.f32 %v832, %v1165
        %v1230 = vmax.f32 %v930, %v1166
        %v1231 = vmax.f32 %v1028, %v1167
        %v1232 = vmax.f32 %v1126, %v1168
        %v1233 = vmax.f32 %v834, %v1169
        %v1234 = vmax.f32 %v932, %v1170
        %v1235 = vmax.f32 %v1030, %v1171
        %v1236 = vmax.f32 %v1128, %v1172
        %v1237 = vmax.f32 %v837, %v1173
        %v1238 = vmax.f32 %v935, %v1174
        %v1239 = vmax.f32 %v1033, %v1175
        %v1240 = vmax.f32 %v1131, %v1176
        %v1241 = vmax.f32 %v839, %v1177
        %v1242 = vmax.f32 %v937, %v1178
        %v1243 = vmax.f32 %v1035, %v1179
        %v1244 = vmax.f32 %v1133, %v1180
        %v1245 = vmax.f32 %v842, %v1181
        %v1246 = vmax.f32 %v940, %v1182
        %v1247 = vmax.f32 %v1038, %v1183
        %v1248 = vmax.f32 %v1136, %v1184
        %v1249 = vmax.f32 %v844, %v1185
        %v1250 = vmax.f32 %v942, %v1186
        %v1251 = vmax.f32 %v1040, %v1187
        %v1252 = vmax.f32 %v1138, %v1188
        %v1253 = vmax.f32 %v847, %v1189
        %v1254 = vmax.f32 %v945, %v1190
        %v1255 = vmax.f32 %v1043, %v1191
        %v1256 = vmax.f32 %v1141, %v1192
        %v1257 = vmax.f32 %v849, %v1193
        %v1258 = vmax.f32 %v947, %v1194
        %v1259 = vmax.f32 %v1045, %v1195
        %v1260 = vmax.f32 %v1143, %v1196
        %v1261 = vmax.f32 %v852, %v1197
        %v1262 = vmax.f32 %v950, %v1198
        %v1263 = vmax.f32 %v1048, %v1199
        %v1264 = vmax.f32 %v1146, %v1200
        %v1265 = vmax.f32 %v854, %v1201
        %v1266 = vmax.f32 %v952, %v1202
        %v1267 = vmax.f32 %v1050, %v1203
        %v1268 = vmax.f32 %v1148, %v1204
        %v1269 = vmax.f32 %v857, %v1205
        %v1270 = vmax.f32 %v955, %v1206
        %v1271 = vmax.f32 %v1053, %v1207
        %v1272 = vmax.f32 %v1151, %v1208
        %v1273 = vmax.f32 %v859, %v1209
        %v1274 = vmax.f32 %v957, %v1210
        %v1275 = vmax.f32 %v1055, %v1211
        %v1276 = vmax.f32 %v1153, %v1212
        %v1277 = vmax.f32 %v862, %v1213
        %v1278 = vmax.f32 %v960, %v1214
        %v1279 = vmax.f32 %v1058, %v1215
        %v1280 = vmax.f32 %v1156, %v1216
        %v1281 = vmax.f32 %v864, %v1217
        %v1282 = vmax.f32 %v962, %v1218
        %v1283 = vmax.f32 %v1060, %v1219
        %v1284 = vmax.f32 %v1158, %v1220
        %v1285 = vmax.f32 %v867, %v1221
        %v1286 = vmax.f32 %v965, %v1222
        %v1287 = vmax.f32 %v1063, %v1223
        %v1288 = vmax.f32 %v1161, %v1224
        %v1289 = vmax.f32 %v869, %v1225
        %v1290 = vmax.f32 %v967, %v1226
        %v1291 = vmax.f32 %v1065, %v1227
        %v1292 = vmax.f32 %v1163, %v1228
        %v1293 = vpack.c.bf16 %v1233, %v1229
        %v1294 = vpack.c.bf16 %v1234, %v1230
        %v1295 = vpack.c.bf16 %v1235, %v1231
        %v1296 = vpack.c.bf16 %v1236, %v1232
        %v1297 = vpack.c.bf16 %v1241, %v1237
        %v1298 = vpack.c.bf16 %v1242, %v1238
        %v1299 = vpack.c.bf16 %v1243, %v1239
        %v1300 = vpack.c.bf16 %v1244, %v1240
        %v1301 = vpack.c.bf16 %v1249, %v1245
        %v1302 = vpack.c.bf16 %v1250, %v1246
        %v1303 = vpack.c.bf16 %v1251, %v1247
        %v1304 = vpack.c.bf16 %v1252, %v1248
        %v1305 = vpack.c.bf16 %v1257, %v1253
        %v1306 = vpack.c.bf16 %v1258, %v1254
        %v1307 = vpack.c.bf16 %v1259, %v1255
        %v1308 = vpack.c.bf16 %v1260, %v1256
        %v1309 = vpack.c.bf16 %v1265, %v1261
        %v1310 = vpack.c.bf16 %v1266, %v1262
        %v1311 = vpack.c.bf16 %v1267, %v1263
        %v1312 = vpack.c.bf16 %v1268, %v1264
        %v1313 = vpack.c.bf16 %v1273, %v1269
        %v1314 = vpack.c.bf16 %v1274, %v1270
        %v1315 = vpack.c.bf16 %v1275, %v1271
        %v1316 = vpack.c.bf16 %v1276, %v1272
        %v1317 = vpack.c.bf16 %v1281, %v1277
        %v1318 = vpack.c.bf16 %v1282, %v1278
        %v1319 = vpack.c.bf16 %v1283, %v1279
        %v1320 = vpack.c.bf16 %v1284, %v1280
        %v1321 = vpack.c.bf16 %v1289, %v1285
        %v1322 = vpack.c.bf16 %v1290, %v1286
        %v1323 = vpack.c.bf16 %v1291, %v1287
        %v1324 = vpack.c.bf16 %v1292, %v1288
        %v1325 = vld [vmem:[%s3] sm:$0xff]
        %v1326 = vld [vmem:[%s3 + $0x8] sm:$0xff]
        %v1327 = vld [vmem:[%s3 + $0x10] sm:$0xff]
        %v1328 = vld [vmem:[%s3 + $0x18] sm:$0xff]
        %v1329 = vld [vmem:[%s3 + $0x20] sm:$0xff]
        %v1330 = vld [vmem:[%s3 + $0x28] sm:$0xff]
        %v1331 = vld [vmem:[%s3 + $0x30] sm:$0xff]
        %v1332 = vld [vmem:[%s3 + $0x38] sm:$0xff]
        %v1333 = vld [vmem:[%s3 + $0x40] sm:$0xff]
        %v1334 = vld [vmem:[%s3 + $0x48] sm:$0xff]
        %v1335 = vld [vmem:[%s3 + $0x50] sm:$0xff]
        %v1336 = vld [vmem:[%s3 + $0x58] sm:$0xff]
        %v1337 = vld [vmem:[%s3 + $0x60] sm:$0xff]
        %v1338 = vld [vmem:[%s3 + $0x68] sm:$0xff]
        %v1339 = vld [vmem:[%s3 + $0x70] sm:$0xff]
        %v1340 = vld [vmem:[%s3 + $0x78] sm:$0xff]
        %v1341 = vld [vmem:[%s3 + $0x80] sm:$0xff]
        %v1342 = vld [vmem:[%s3 + $0x88] sm:$0xff]
        %v1343 = vld [vmem:[%s3 + $0x90] sm:$0xff]
        %v1344 = vld [vmem:[%s3 + $0x98] sm:$0xff]
        %v1345 = vld [vmem:[%s3 + $0xa0] sm:$0xff]
        %v1346 = vld [vmem:[%s3 + $0xa8] sm:$0xff]
        %v1347 = vld [vmem:[%s3 + $0xb0] sm:$0xff]
        %v1348 = vld [vmem:[%s3 + $0xb8] sm:$0xff]
        %v1349 = vld [vmem:[%s3 + $0xc0] sm:$0xff]
        %v1350 = vld [vmem:[%s3 + $0xc8] sm:$0xff]
        %v1351 = vld [vmem:[%s3 + $0xd0] sm:$0xff]
        %v1352 = vld [vmem:[%s3 + $0xd8] sm:$0xff]
        %v1353 = vld [vmem:[%s3 + $0xe0] sm:$0xff]
        %v1354 = vld [vmem:[%s3 + $0xe8] sm:$0xff]
        %v1355 = vld [vmem:[%s3 + $0xf0] sm:$0xff]
        %v1356 = vld [vmem:[%s3 + $0xf8] sm:$0xff]
        %v1357 = vld [vmem:[%s3 + $0x100] sm:$0xff]
        %v1358 = vld [vmem:[%s3 + $0x108] sm:$0xff]
        %v1359 = vld [vmem:[%s3 + $0x110] sm:$0xff]
        %v1360 = vld [vmem:[%s3 + $0x118] sm:$0xff]
        %v1361 = vld [vmem:[%s3 + $0x120] sm:$0xff]
        %v1362 = vld [vmem:[%s3 + $0x128] sm:$0xff]
        %v1363 = vld [vmem:[%s3 + $0x130] sm:$0xff]
        %v1364 = vld [vmem:[%s3 + $0x138] sm:$0xff]
        %v1365 = vld [vmem:[%s3 + $0x140] sm:$0xff]
        %v1366 = vld [vmem:[%s3 + $0x148] sm:$0xff]
        %v1367 = vld [vmem:[%s3 + $0x150] sm:$0xff]
        %v1368 = vld [vmem:[%s3 + $0x158] sm:$0xff]
        %v1369 = vld [vmem:[%s3 + $0x160] sm:$0xff]
        %v1370 = vld [vmem:[%s3 + $0x168] sm:$0xff]
        %v1371 = vld [vmem:[%s3 + $0x170] sm:$0xff]
        %v1372 = vld [vmem:[%s3 + $0x178] sm:$0xff]
        %v1373 = vld [vmem:[%s3 + $0x180] sm:$0xff]
        %v1374 = vld [vmem:[%s3 + $0x188] sm:$0xff]
        %v1375 = vld [vmem:[%s3 + $0x190] sm:$0xff]
        %v1376 = vld [vmem:[%s3 + $0x198] sm:$0xff]
        %v1377 = vld [vmem:[%s3 + $0x1a0] sm:$0xff]
        %v1378 = vld [vmem:[%s3 + $0x1a8] sm:$0xff]
        %v1379 = vld [vmem:[%s3 + $0x1b0] sm:$0xff]
        %v1380 = vld [vmem:[%s3 + $0x1b8] sm:$0xff]
        %v1381 = vld [vmem:[%s3 + $0x1c0] sm:$0xff]
        %v1382 = vld [vmem:[%s3 + $0x1c8] sm:$0xff]
        %v1383 = vld [vmem:[%s3 + $0x1d0] sm:$0xff]
        %v1384 = vld [vmem:[%s3 + $0x1d8] sm:$0xff]
        %v1385 = vld [vmem:[%s3 + $0x1e0] sm:$0xff]
        %v1386 = vld [vmem:[%s3 + $0x1e8] sm:$0xff]
        %v1387 = vld [vmem:[%s3 + $0x1f0] sm:$0xff]
        %v1388 = vld [vmem:[%s3 + $0x1f8] sm:$0xff]
        %v1389 = vld [vmem:[#allocation5] sm:$0x3]
        %v1391 = vperm.slane %v1389, 0
        %v1392 = vperm.slane %v1389, 1
        %v1459 = vunpack.c.l.b16 %v1325
        %v1460 = vunpack.c.h.b16 %v1325
        %v1461 = vunpack.c.l.b16 %v1326
        %v1462 = vunpack.c.h.b16 %v1326
        %v1463 = vunpack.c.l.b16 %v1327
        %v1464 = vunpack.c.h.b16 %v1327
        %v1465 = vunpack.c.l.b16 %v1328
        %v1466 = vunpack.c.h.b16 %v1328
        %v1467 = vunpack.c.l.b16 %v1329
        %v1468 = vunpack.c.h.b16 %v1329
        %v1469 = vunpack.c.l.b16 %v1330
        %v1470 = vunpack.c.h.b16 %v1330
        %v1471 = vunpack.c.l.b16 %v1331
        %v1472 = vunpack.c.h.b16 %v1331
        %v1473 = vunpack.c.l.b16 %v1332
        %v1474 = vunpack.c.h.b16 %v1332
        %v1475 = vunpack.c.l.b16 %v1333
        %v1476 = vunpack.c.h.b16 %v1333
        %v1477 = vunpack.c.l.b16 %v1334
        %v1478 = vunpack.c.h.b16 %v1334
        %v1479 = vunpack.c.l.b16 %v1335
        %v1480 = vunpack.c.h.b16 %v1335
        %v1481 = vunpack.c.l.b16 %v1336
        %v1482 = vunpack.c.h.b16 %v1336
        %v1483 = vunpack.c.l.b16 %v1337
        %v1484 = vunpack.c.h.b16 %v1337
        %v1485 = vunpack.c.l.b16 %v1338
        %v1486 = vunpack.c.h.b16 %v1338
        %v1487 = vunpack.c.l.b16 %v1339
        %v1488 = vunpack.c.h.b16 %v1339
        %v1489 = vunpack.c.l.b16 %v1340
        %v1490 = vunpack.c.h.b16 %v1340
        %v1491 = vunpack.c.l.b16 %v1341
        %v1492 = vunpack.c.h.b16 %v1341
        %v1493 = vunpack.c.l.b16 %v1342
        %v1494 = vunpack.c.h.b16 %v1342
        %v1495 = vunpack.c.l.b16 %v1343
        %v1496 = vunpack.c.h.b16 %v1343
        %v1497 = vunpack.c.l.b16 %v1344
        %v1498 = vunpack.c.h.b16 %v1344
        %v1499 = vunpack.c.l.b16 %v1345
        %v1500 = vunpack.c.h.b16 %v1345
        %v1501 = vunpack.c.l.b16 %v1346
        %v1502 = vunpack.c.h.b16 %v1346
        %v1503 = vunpack.c.l.b16 %v1347
        %v1504 = vunpack.c.h.b16 %v1347
        %v1505 = vunpack.c.l.b16 %v1348
        %v1506 = vunpack.c.h.b16 %v1348
        %v1507 = vunpack.c.l.b16 %v1349
        %v1508 = vunpack.c.h.b16 %v1349
        %v1509 = vunpack.c.l.b16 %v1350
        %v1510 = vunpack.c.h.b16 %v1350
        %v1511 = vunpack.c.l.b16 %v1351
        %v1512 = vunpack.c.h.b16 %v1351
        %v1513 = vunpack.c.l.b16 %v1352
        %v1514 = vunpack.c.h.b16 %v1352
        %v1515 = vunpack.c.l.b16 %v1353
        %v1516 = vunpack.c.h.b16 %v1353
        %v1517 = vunpack.c.l.b16 %v1354
        %v1518 = vunpack.c.h.b16 %v1354
        %v1519 = vunpack.c.l.b16 %v1355
        %v1520 = vunpack.c.h.b16 %v1355
        %v1521 = vunpack.c.l.b16 %v1356
        %v1522 = vunpack.c.h.b16 %v1356
        %v1523 = vunpack.c.l.b16 %v1357
        %v1524 = vunpack.c.h.b16 %v1357
        %v1525 = vunpack.c.l.b16 %v1358
        %v1526 = vunpack.c.h.b16 %v1358
        %v1527 = vunpack.c.l.b16 %v1359
        %v1528 = vunpack.c.h.b16 %v1359
        %v1529 = vunpack.c.l.b16 %v1360
        %v1530 = vunpack.c.h.b16 %v1360
        %v1531 = vunpack.c.l.b16 %v1361
        %v1532 = vunpack.c.h.b16 %v1361
        %v1533 = vunpack.c.l.b16 %v1362
        %v1534 = vunpack.c.h.b16 %v1362
        %v1535 = vunpack.c.l.b16 %v1363
        %v1536 = vunpack.c.h.b16 %v1363
        %v1537 = vunpack.c.l.b16 %v1364
        %v1538 = vunpack.c.h.b16 %v1364
        %v1539 = vunpack.c.l.b16 %v1365
        %v1540 = vunpack.c.h.b16 %v1365
        %v1541 = vunpack.c.l.b16 %v1366
        %v1542 = vunpack.c.h.b16 %v1366
        %v1543 = vunpack.c.l.b16 %v1367
        %v1544 = vunpack.c.h.b16 %v1367
        %v1545 = vunpack.c.l.b16 %v1368
        %v1546 = vunpack.c.h.b16 %v1368
        %v1547 = vunpack.c.l.b16 %v1369
        %v1548 = vunpack.c.h.b16 %v1369
        %v1549 = vunpack.c.l.b16 %v1370
        %v1550 = vunpack.c.h.b16 %v1370
        %v1551 = vunpack.c.l.b16 %v1371
        %v1552 = vunpack.c.h.b16 %v1371
        %v1553 = vunpack.c.l.b16 %v1372
        %v1554 = vunpack.c.h.b16 %v1372
        %v1555 = vunpack.c.l.b16 %v1373
        %v1556 = vunpack.c.h.b16 %v1373
        %v1557 = vunpack.c.l.b16 %v1374
        %v1558 = vunpack.c.h.b16 %v1374
        %v1559 = vunpack.c.l.b16 %v1375
        %v1560 = vunpack.c.h.b16 %v1375
        %v1561 = vunpack.c.l.b16 %v1376
        %v1562 = vunpack.c.h.b16 %v1376
        %v1563 = vunpack.c.l.b16 %v1377
        %v1564 = vunpack.c.h.b16 %v1377
        %v1565 = vunpack.c.l.b16 %v1378
        %v1566 = vunpack.c.h.b16 %v1378
        %v1567 = vunpack.c.l.b16 %v1379
        %v1568 = vunpack.c.h.b16 %v1379
        %v1569 = vunpack.c.l.b16 %v1380
        %v1570 = vunpack.c.h.b16 %v1380
        %v1571 = vunpack.c.l.b16 %v1381
        %v1572 = vunpack.c.h.b16 %v1381
        %v1573 = vunpack.c.l.b16 %v1382
        %v1574 = vunpack.c.h.b16 %v1382
        %v1575 = vunpack.c.l.b16 %v1383
        %v1576 = vunpack.c.h.b16 %v1383
        %v1577 = vunpack.c.l.b16 %v1384
        %v1578 = vunpack.c.h.b16 %v1384
        %v1579 = vunpack.c.l.b16 %v1385
        %v1580 = vunpack.c.h.b16 %v1385
        %v1581 = vunpack.c.l.b16 %v1386
        %v1582 = vunpack.c.h.b16 %v1386
        %v1583 = vunpack.c.l.b16 %v1387
        %v1584 = vunpack.c.h.b16 %v1387
        %v1585 = vunpack.c.l.b16 %v1388
        %v1586 = vunpack.c.h.b16 %v1388
        %v1587 = vpack.c.b16 %v1461, %v1459
        %v1588 = vpack.c.b16 %v1462, %v1460
        %v1589 = vpack.c.b16 %v1465, %v1463
        %v1590 = vpack.c.b16 %v1466, %v1464
        %v1591 = vpack.c.b16 %v1469, %v1467
        %v1592 = vpack.c.b16 %v1470, %v1468
        %v1593 = vpack.c.b16 %v1473, %v1471
        %v1594 = vpack.c.b16 %v1474, %v1472
        %v1595 = vpack.c.b16 %v1477, %v1475
        %v1596 = vpack.c.b16 %v1478, %v1476
        %v1597 = vpack.c.b16 %v1481, %v1479
        %v1598 = vpack.c.b16 %v1482, %v1480
        %v1599 = vpack.c.b16 %v1485, %v1483
        %v1600 = vpack.c.b16 %v1486, %v1484
        %v1601 = vpack.c.b16 %v1489, %v1487
        %v1602 = vpack.c.b16 %v1490, %v1488
        %v1603 = vpack.c.b16 %v1493, %v1491
        %v1604 = vpack.c.b16 %v1494, %v1492
        %v1605 = vpack.c.b16 %v1497, %v1495
        %v1606 = vpack.c.b16 %v1498, %v1496
        %v1607 = vpack.c.b16 %v1501, %v1499
        %v1608 = vpack.c.b16 %v1502, %v1500
        %v1609 = vpack.c.b16 %v1505, %v1503
        %v1610 = vpack.c.b16 %v1506, %v1504
        %v1611 = vpack.c.b16 %v1509, %v1507
        %v1612 = vpack.c.b16 %v1510, %v1508
        %v1613 = vpack.c.b16 %v1513, %v1511
        %v1614 = vpack.c.b16 %v1514, %v1512
        %v1615 = vpack.c.b16 %v1517, %v1515
        %v1616 = vpack.c.b16 %v1518, %v1516
        %v1617 = vpack.c.b16 %v1521, %v1519
        %v1618 = vpack.c.b16 %v1522, %v1520
        %v1619 = vpack.c.b16 %v1525, %v1523
        %v1620 = vpack.c.b16 %v1526, %v1524
        %v1621 = vpack.c.b16 %v1529, %v1527
        %v1622 = vpack.c.b16 %v1530, %v1528
        %v1623 = vpack.c.b16 %v1533, %v1531
        %v1624 = vpack.c.b16 %v1534, %v1532
        %v1625 = vpack.c.b16 %v1537, %v1535
        %v1626 = vpack.c.b16 %v1538, %v1536
        %v1627 = vpack.c.b16 %v1541, %v1539
        %v1628 = vpack.c.b16 %v1542, %v1540
        %v1629 = vpack.c.b16 %v1545, %v1543
        %v1630 = vpack.c.b16 %v1546, %v1544
        %v1631 = vpack.c.b16 %v1549, %v1547
        %v1632 = vpack.c.b16 %v1550, %v1548
        %v1633 = vpack.c.b16 %v1553, %v1551
        %v1634 = vpack.c.b16 %v1554, %v1552
        %v1635 = vpack.c.b16 %v1557, %v1555
        %v1636 = vpack.c.b16 %v1558, %v1556
        %v1637 = vpack.c.b16 %v1561, %v1559
        %v1638 = vpack.c.b16 %v1562, %v1560
        %v1639 = vpack.c.b16 %v1565, %v1563
        %v1640 = vpack.c.b16 %v1566, %v1564
        %v1641 = vpack.c.b16 %v1569, %v1567
        %v1642 = vpack.c.b16 %v1570, %v1568
        %v1643 = vpack.c.b16 %v1573, %v1571
        %v1644 = vpack.c.b16 %v1574, %v1572
        %v1645 = vpack.c.b16 %v1577, %v1575
        %v1646 = vpack.c.b16 %v1578, %v1576
        %v1647 = vpack.c.b16 %v1581, %v1579
        %v1648 = vpack.c.b16 %v1582, %v1580
        %v1649 = vpack.c.b16 %v1585, %v1583
        %v1650 = vpack.c.b16 %v1586, %v1584
        %1715 = vmatpush.bf16.msra.mxu0 %v1601
        %1716 = vmatpush.bf16.msra.mxu0 %v1599
        %1717 = vmatpush.bf16.msra.mxu0 %v1597
        %1718 = vmatpush.bf16.msra.mxu0 %v1595
        %1719 = vmatpush.bf16.msra.mxu0 %v1593
        %1720 = vmatpush.bf16.msra.mxu0 %v1591
        %1721 = vmatpush.bf16.msra.mxu0 %v1589
        %1722 = vmatpush.bf16.msra.mxu0 %v1587
        %1723 = vmatmul.bf16.gmra.mxu0 %v1293
        %v1724 = vpop.f32.mrf.mxu0
        %v1725 = vadd.f32 %v1391, %v1724
        %v1726 = vpop.f32.mrf.mxu0
        %v1727 = vadd.f32 %v1391, %v1726
        %1728 = vmatmul.bf16.gmra.mxu0 %v1297
        %v1729 = vpop.f32.mrf.mxu0
        %v1730 = vadd.f32 %v1391, %v1729
        %v1731 = vpop.f32.mrf.mxu0
        %v1732 = vadd.f32 %v1391, %v1731
        %1733 = vmatmul.bf16.gmra.mxu0 %v1301
        %v1734 = vpop.f32.mrf.mxu0
        %v1735 = vadd.f32 %v1391, %v1734
        %v1736 = vpop.f32.mrf.mxu0
        %v1737 = vadd.f32 %v1391, %v1736
        %1738 = vmatmul.bf16.gmra.mxu0 %v1305
        %v1739 = vpop.f32.mrf.mxu0
        %v1740 = vadd.f32 %v1391, %v1739
        %v1741 = vpop.f32.mrf.mxu0
        %v1742 = vadd.f32 %v1391, %v1741
        %1743 = vmatmul.bf16.gmra.mxu0 %v1309
        %v1744 = vpop.f32.mrf.mxu0
        %v1745 = vadd.f32 %v1391, %v1744
        %v1746 = vpop.f32.mrf.mxu0
        %v1747 = vadd.f32 %v1391, %v1746
        %1748 = vmatmul.bf16.gmra.mxu0 %v1313
        %v1749 = vpop.f32.mrf.mxu0
        %v1750 = vadd.f32 %v1391, %v1749
        %v1751 = vpop.f32.mrf.mxu0
        %v1752 = vadd.f32 %v1391, %v1751
        %1753 = vmatmul.bf16.gmra.mxu0 %v1317
        %v1754 = vpop.f32.mrf.mxu0
        %v1755 = vadd.f32 %v1391, %v1754
        %v1756 = vpop.f32.mrf.mxu0
        %v1757 = vadd.f32 %v1391, %v1756
        %1758 = vmatmul.bf16.gmra.mxu0 %v1321
        %v1759 = vpop.f32.mrf.mxu0
        %v1760 = vadd.f32 %v1391, %v1759
        %v1761 = vpop.f32.mrf.mxu0
        %v1762 = vadd.f32 %v1391, %v1761
        %1763 = vdwg.mxu0
        %1764 = vmatpush.bf16.msra.mxu0 %v1617
        %1765 = vmatpush.bf16.msra.mxu0 %v1615
        %1766 = vmatpush.bf16.msra.mxu0 %v1613
        %1767 = vmatpush.bf16.msra.mxu0 %v1611
        %1768 = vmatpush.bf16.msra.mxu0 %v1609
        %1769 = vmatpush.bf16.msra.mxu0 %v1607
        %1770 = vmatpush.bf16.msra.mxu0 %v1605
        %1771 = vmatpush.bf16.msra.mxu0 %v1603
        %1772 = vmatmul.bf16.gmra.mxu0 %v1294
        %v1773 = vpop.f32.mrf.mxu0
        %v1774 = vadd.f32 %v1725, %v1773
        %v1775 = vpop.f32.mrf.mxu0
        %v1776 = vadd.f32 %v1727, %v1775
        %1777 = vmatmul.bf16.gmra.mxu0 %v1298
        %v1778 = vpop.f32.mrf.mxu0
        %v1779 = vadd.f32 %v1730, %v1778
        %v1780 = vpop.f32.mrf.mxu0
        %v1781 = vadd.f32 %v1732, %v1780
        %1782 = vmatmul.bf16.gmra.mxu0 %v1302
        %v1783 = vpop.f32.mrf.mxu0
        %v1784 = vadd.f32 %v1735, %v1783
        %v1785 = vpop.f32.mrf.mxu0
        %v1786 = vadd.f32 %v1737, %v1785
        %1787 = vmatmul.bf16.gmra.mxu0 %v1306
        %v1788 = vpop.f32.mrf.mxu0
        %v1789 = vadd.f32 %v1740, %v1788
        %v1790 = vpop.f32.mrf.mxu0
        %v1791 = vadd.f32 %v1742, %v1790
        %1792 = vmatmul.bf16.gmra.mxu0 %v1310
        %v1793 = vpop.f32.mrf.mxu0
        %v1794 = vadd.f32 %v1745, %v1793
        %v1795 = vpop.f32.mrf.mxu0
        %v1796 = vadd.f32 %v1747, %v1795
        %1797 = vmatmul.bf16.gmra.mxu0 %v1314
        %v1798 = vpop.f32.mrf.mxu0
        %v1799 = vadd.f32 %v1750, %v1798
        %v1800 = vpop.f32.mrf.mxu0
        %v1801 = vadd.f32 %v1752, %v1800
        %1802 = vmatmul.bf16.gmra.mxu0 %v1318
        %v1803 = vpop.f32.mrf.mxu0
        %v1804 = vadd.f32 %v1755, %v1803
        %v1805 = vpop.f32.mrf.mxu0
        %v1806 = vadd.f32 %v1757, %v1805
        %1807 = vmatmul.bf16.gmra.mxu0 %v1322
        %v1808 = vpop.f32.mrf.mxu0
        %v1809 = vadd.f32 %v1760, %v1808
        %v1810 = vpop.f32.mrf.mxu0
        %v1811 = vadd.f32 %v1762, %v1810
        %1812 = vdwg.mxu0
        %1813 = vmatpush.bf16.msra.mxu0 %v1633
        %1814 = vmatpush.bf16.msra.mxu0 %v1631
        %1815 = vmatpush.bf16.msra.mxu0 %v1629
        %1816 = vmatpush.bf16.msra.mxu0 %v1627
        %1817 = vmatpush.bf16.msra.mxu0 %v1625
        %1818 = vmatpush.bf16.msra.mxu0 %v1623
        %1819 = vmatpush.bf16.msra.mxu0 %v1621
        %1820 = vmatpush.bf16.msra.mxu0 %v1619
        %1821 = vmatmul.bf16.gmra.mxu0 %v1295
        %v1822 = vpop.f32.mrf.mxu0
        %v1823 = vadd.f32 %v1774, %v1822
        %v1824 = vpop.f32.mrf.mxu0
        %v1825 = vadd.f32 %v1776, %v1824
        %1826 = vmatmul.bf16.gmra.mxu0 %v1299
        %v1827 = vpop.f32.mrf.mxu0
        %v1828 = vadd.f32 %v1779, %v1827
        %v1829 = vpop.f32.mrf.mxu0
        %v1830 = vadd.f32 %v1781, %v1829
        %1831 = vmatmul.bf16.gmra.mxu0 %v1303
        %v1832 = vpop.f32.mrf.mxu0
        %v1833 = vadd.f32 %v1784, %v1832
        %v1834 = vpop.f32.mrf.mxu0
        %v1835 = vadd.f32 %v1786, %v1834
        %1836 = vmatmul.bf16.gmra.mxu0 %v1307
        %v1837 = vpop.f32.mrf.mxu0
        %v1838 = vadd.f32 %v1789, %v1837
        %v1839 = vpop.f32.mrf.mxu0
        %v1840 = vadd.f32 %v1791, %v1839
        %1841 = vmatmul.bf16.gmra.mxu0 %v1311
        %v1842 = vpop.f32.mrf.mxu0
        %v1843 = vadd.f32 %v1794, %v1842
        %v1844 = vpop.f32.mrf.mxu0
        %v1845 = vadd.f32 %v1796, %v1844
        %1846 = vmatmul.bf16.gmra.mxu0 %v1315
        %v1847 = vpop.f32.mrf.mxu0
        %v1848 = vadd.f32 %v1799, %v1847
        %v1849 = vpop.f32.mrf.mxu0
        %v1850 = vadd.f32 %v1801, %v1849
        %1851 = vmatmul.bf16.gmra.mxu0 %v1319
        %v1852 = vpop.f32.mrf.mxu0
        %v1853 = vadd.f32 %v1804, %v1852
        %v1854 = vpop.f32.mrf.mxu0
        %v1855 = vadd.f32 %v1806, %v1854
        %1856 = vmatmul.bf16.gmra.mxu0 %v1323
        %v1857 = vpop.f32.mrf.mxu0
        %v1858 = vadd.f32 %v1809, %v1857
        %v1859 = vpop.f32.mrf.mxu0
        %v1860 = vadd.f32 %v1811, %v1859
        %1861 = vdwg.mxu0
        %1862 = vmatpush.bf16.msra.mxu0 %v1649
        %1863 = vmatpush.bf16.msra.mxu0 %v1647
        %1864 = vmatpush.bf16.msra.mxu0 %v1645
        %1865 = vmatpush.bf16.msra.mxu0 %v1643
        %1866 = vmatpush.bf16.msra.mxu0 %v1641
        %1867 = vmatpush.bf16.msra.mxu0 %v1639
        %1868 = vmatpush.bf16.msra.mxu0 %v1637
        %1869 = vmatpush.bf16.msra.mxu0 %v1635
        %1870 = vmatmul.bf16.gmra.mxu0 %v1296
        %v1871 = vpop.f32.mrf.mxu0
        %v1872 = vadd.f32 %v1823, %v1871
        %v1873 = vpop.f32.mrf.mxu0
        %v1874 = vadd.f32 %v1825, %v1873
        %1875 = vmatmul.bf16.gmra.mxu0 %v1300
        %v1876 = vpop.f32.mrf.mxu0
        %v1877 = vadd.f32 %v1828, %v1876
        %v1878 = vpop.f32.mrf.mxu0
        %v1879 = vadd.f32 %v1830, %v1878
        %1880 = vmatmul.bf16.gmra.mxu0 %v1304
        %v1881 = vpop.f32.mrf.mxu0
        %v1882 = vadd.f32 %v1833, %v1881
        %v1883 = vpop.f32.mrf.mxu0
        %v1884 = vadd.f32 %v1835, %v1883
        %1885 = vmatmul.bf16.gmra.mxu0 %v1308
        %v1886 = vpop.f32.mrf.mxu0
        %v1887 = vadd.f32 %v1838, %v1886
        %v1888 = vpop.f32.mrf.mxu0
        %v1889 = vadd.f32 %v1840, %v1888
        %1890 = vmatmul.bf16.gmra.mxu0 %v1312
        %v1891 = vpop.f32.mrf.mxu0
        %v1892 = vadd.f32 %v1843, %v1891
        %v1893 = vpop.f32.mrf.mxu0
        %v1894 = vadd.f32 %v1845, %v1893
        %1895 = vmatmul.bf16.gmra.mxu0 %v1316
        %v1896 = vpop.f32.mrf.mxu0
        %v1897 = vadd.f32 %v1848, %v1896
        %v1898 = vpop.f32.mrf.mxu0
        %v1899 = vadd.f32 %v1850, %v1898
        %1900 = vmatmul.bf16.gmra.mxu0 %v1320
        %v1901 = vpop.f32.mrf.mxu0
        %v1902 = vadd.f32 %v1853, %v1901
        %v1903 = vpop.f32.mrf.mxu0
        %v1904 = vadd.f32 %v1855, %v1903
        %1905 = vmatmul.bf16.gmra.mxu0 %v1324
        %v1906 = vpop.f32.mrf.mxu0
        %v1907 = vadd.f32 %v1858, %v1906
        %v1908 = vpop.f32.mrf.mxu0
        %v1909 = vadd.f32 %v1860, %v1908
        %1910 = vdwg.mxu0
        %1911 = vmatpush.bf16.msra.mxu0 %v1602
        %1912 = vmatpush.bf16.msra.mxu0 %v1600
        %1913 = vmatpush.bf16.msra.mxu0 %v1598
        %1914 = vmatpush.bf16.msra.mxu0 %v1596
        %1915 = vmatpush.bf16.msra.mxu0 %v1594
        %1916 = vmatpush.bf16.msra.mxu0 %v1592
        %1917 = vmatpush.bf16.msra.mxu0 %v1590
        %1918 = vmatpush.bf16.msra.mxu0 %v1588
        %1919 = vmatmul.bf16.gmra.mxu0 %v1293
        %v1920 = vpop.f32.mrf.mxu0
        %v1921 = vadd.f32 %v1392, %v1920
        %v1922 = vpop.f32.mrf.mxu0
        %v1923 = vadd.f32 %v1392, %v1922
        %1924 = vmatmul.bf16.gmra.mxu0 %v1297
        %v1925 = vpop.f32.mrf.mxu0
        %v1926 = vadd.f32 %v1392, %v1925
        %v1927 = vpop.f32.mrf.mxu0
        %v1928 = vadd.f32 %v1392, %v1927
        %1929 = vmatmul.bf16.gmra.mxu0 %v1301
        %v1930 = vpop.f32.mrf.mxu0
        %v1931 = vadd.f32 %v1392, %v1930
        %v1932 = vpop.f32.mrf.mxu0
        %v1933 = vadd.f32 %v1392, %v1932
        %1934 = vmatmul.bf16.gmra.mxu0 %v1305
        %v1935 = vpop.f32.mrf.mxu0
        %v1936 = vadd.f32 %v1392, %v1935
        %v1937 = vpop.f32.mrf.mxu0
        %v1938 = vadd.f32 %v1392, %v1937
        %1939 = vmatmul.bf16.gmra.mxu0 %v1309
        %v1940 = vpop.f32.mrf.mxu0
        %v1941 = vadd.f32 %v1392, %v1940
        %v1942 = vpop.f32.mrf.mxu0
        %v1943 = vadd.f32 %v1392, %v1942
        %1944 = vmatmul.bf16.gmra.mxu0 %v1313
        %v1945 = vpop.f32.mrf.mxu0
        %v1946 = vadd.f32 %v1392, %v1945
        %v1947 = vpop.f32.mrf.mxu0
        %v1948 = vadd.f32 %v1392, %v1947
        %1949 = vmatmul.bf16.gmra.mxu0 %v1317
        %v1950 = vpop.f32.mrf.mxu0
        %v1951 = vadd.f32 %v1392, %v1950
        %v1952 = vpop.f32.mrf.mxu0
        %v1953 = vadd.f32 %v1392, %v1952
        %1954 = vmatmul.bf16.gmra.mxu0 %v1321
        %v1955 = vpop.f32.mrf.mxu0
        %v1956 = vadd.f32 %v1392, %v1955
        %v1957 = vpop.f32.mrf.mxu0
        %v1958 = vadd.f32 %v1392, %v1957
        %1959 = vdwg.mxu0
        %1960 = vmatpush.bf16.msra.mxu0 %v1618
        %1961 = vmatpush.bf16.msra.mxu0 %v1616
        %1962 = vmatpush.bf16.msra.mxu0 %v1614
        %1963 = vmatpush.bf16.msra.mxu0 %v1612
        %1964 = vmatpush.bf16.msra.mxu0 %v1610
        %1965 = vmatpush.bf16.msra.mxu0 %v1608
        %1966 = vmatpush.bf16.msra.mxu0 %v1606
        %1967 = vmatpush.bf16.msra.mxu0 %v1604
        %1968 = vmatmul.bf16.gmra.mxu0 %v1294
        %v1969 = vpop.f32.mrf.mxu0
        %v1970 = vadd.f32 %v1921, %v1969
        %v1971 = vpop.f32.mrf.mxu0
        %v1972 = vadd.f32 %v1923, %v1971
        %1973 = vmatmul.bf16.gmra.mxu0 %v1298
        %v1974 = vpop.f32.mrf.mxu0
        %v1975 = vadd.f32 %v1926, %v1974
        %v1976 = vpop.f32.mrf.mxu0
        %v1977 = vadd.f32 %v1928, %v1976
        %1978 = vmatmul.bf16.gmra.mxu0 %v1302
        %v1979 = vpop.f32.mrf.mxu0
        %v1980 = vadd.f32 %v1931, %v1979
        %v1981 = vpop.f32.mrf.mxu0
        %v1982 = vadd.f32 %v1933, %v1981
        %1983 = vmatmul.bf16.gmra.mxu0 %v1306
        %v1984 = vpop.f32.mrf.mxu0
        %v1985 = vadd.f32 %v1936, %v1984
        %v1986 = vpop.f32.mrf.mxu0
        %v1987 = vadd.f32 %v1938, %v1986
        %1988 = vmatmul.bf16.gmra.mxu0 %v1310
        %v1989 = vpop.f32.mrf.mxu0
        %v1990 = vadd.f32 %v1941, %v1989
        %v1991 = vpop.f32.mrf.mxu0
        %v1992 = vadd.f32 %v1943, %v1991
        %1993 = vmatmul.bf16.gmra.mxu0 %v1314
        %v1994 = vpop.f32.mrf.mxu0
        %v1995 = vadd.f32 %v1946, %v1994
        %v1996 = vpop.f32.mrf.mxu0
        %v1997 = vadd.f32 %v1948, %v1996
        %1998 = vmatmul.bf16.gmra.mxu0 %v1318
        %v1999 = vpop.f32.mrf.mxu0
        %v2000 = vadd.f32 %v1951, %v1999
        %v2001 = vpop.f32.mrf.mxu0
        %v2002 = vadd.f32 %v1953, %v2001
        %2003 = vmatmul.bf16.gmra.mxu0 %v1322
        %v2004 = vpop.f32.mrf.mxu0
        %v2005 = vadd.f32 %v1956, %v2004
        %v2006 = vpop.f32.mrf.mxu0
        %v2007 = vadd.f32 %v1958, %v2006
        %2008 = vdwg.mxu0
        %2009 = vmatpush.bf16.msra.mxu0 %v1634
        %2010 = vmatpush.bf16.msra.mxu0 %v1632
        %2011 = vmatpush.bf16.msra.mxu0 %v1630
        %2012 = vmatpush.bf16.msra.mxu0 %v1628
        %2013 = vmatpush.bf16.msra.mxu0 %v1626
        %2014 = vmatpush.bf16.msra.mxu0 %v1624
        %2015 = vmatpush.bf16.msra.mxu0 %v1622
        %2016 = vmatpush.bf16.msra.mxu0 %v1620
        %2017 = vmatmul.bf16.gmra.mxu0 %v1295
        %v2018 = vpop.f32.mrf.mxu0
        %v2019 = vadd.f32 %v1970, %v2018
        %v2020 = vpop.f32.mrf.mxu0
        %v2021 = vadd.f32 %v1972, %v2020
        %2022 = vmatmul.bf16.gmra.mxu0 %v1299
        %v2023 = vpop.f32.mrf.mxu0
        %v2024 = vadd.f32 %v1975, %v2023
        %v2025 = vpop.f32.mrf.mxu0
        %v2026 = vadd.f32 %v1977, %v2025
        %2027 = vmatmul.bf16.gmra.mxu0 %v1303
        %v2028 = vpop.f32.mrf.mxu0
        %v2029 = vadd.f32 %v1980, %v2028
        %v2030 = vpop.f32.mrf.mxu0
        %v2031 = vadd.f32 %v1982, %v2030
        %2032 = vmatmul.bf16.gmra.mxu0 %v1307
        %v2033 = vpop.f32.mrf.mxu0
        %v2034 = vadd.f32 %v1985, %v2033
        %v2035 = vpop.f32.mrf.mxu0
        %v2036 = vadd.f32 %v1987, %v2035
        %2037 = vmatmul.bf16.gmra.mxu0 %v1311
        %v2038 = vpop.f32.mrf.mxu0
        %v2039 = vadd.f32 %v1990, %v2038
        %v2040 = vpop.f32.mrf.mxu0
        %v2041 = vadd.f32 %v1992, %v2040
        %2042 = vmatmul.bf16.gmra.mxu0 %v1315
        %v2043 = vpop.f32.mrf.mxu0
        %v2044 = vadd.f32 %v1995, %v2043
        %v2045 = vpop.f32.mrf.mxu0
        %v2046 = vadd.f32 %v1997, %v2045
        %2047 = vmatmul.bf16.gmra.mxu0 %v1319
        %v2048 = vpop.f32.mrf.mxu0
        %v2049 = vadd.f32 %v2000, %v2048
        %v2050 = vpop.f32.mrf.mxu0
        %v2051 = vadd.f32 %v2002, %v2050
        %2052 = vmatmul.bf16.gmra.mxu0 %v1323
        %v2053 = vpop.f32.mrf.mxu0
        %v2054 = vadd.f32 %v2005, %v2053
        %v2055 = vpop.f32.mrf.mxu0
        %v2056 = vadd.f32 %v2007, %v2055
        %2057 = vdwg.mxu0
        %2058 = vmatpush.bf16.msra.mxu0 %v1650
        %2059 = vmatpush.bf16.msra.mxu0 %v1648
        %2060 = vmatpush.bf16.msra.mxu0 %v1646
        %2061 = vmatpush.bf16.msra.mxu0 %v1644
        %2062 = vmatpush.bf16.msra.mxu0 %v1642
        %2063 = vmatpush.bf16.msra.mxu0 %v1640
        %2064 = vmatpush.bf16.msra.mxu0 %v1638
        %2065 = vmatpush.bf16.msra.mxu0 %v1636
        %2066 = vmatmul.bf16.gmra.mxu0 %v1296
        %v2067 = vpop.f32.mrf.mxu0
        %v2068 = vadd.f32 %v2019, %v2067
        %v2069 = vpop.f32.mrf.mxu0
        %v2070 = vadd.f32 %v2021, %v2069
        %2071 = vmatmul.bf16.gmra.mxu0 %v1300
        %v2072 = vpop.f32.mrf.mxu0
        %v2073 = vadd.f32 %v2024, %v2072
        %v2074 = vpop.f32.mrf.mxu0
        %v2075 = vadd.f32 %v2026, %v2074
        %2076 = vmatmul.bf16.gmra.mxu0 %v1304
        %v2077 = vpop.f32.mrf.mxu0
        %v2078 = vadd.f32 %v2029, %v2077
        %v2079 = vpop.f32.mrf.mxu0
        %v2080 = vadd.f32 %v2031, %v2079
        %2081 = vmatmul.bf16.gmra.mxu0 %v1308
        %v2082 = vpop.f32.mrf.mxu0
        %v2083 = vadd.f32 %v2034, %v2082
        %v2084 = vpop.f32.mrf.mxu0
        %v2085 = vadd.f32 %v2036, %v2084
        %2086 = vmatmul.bf16.gmra.mxu0 %v1312
        %v2087 = vpop.f32.mrf.mxu0
        %v2088 = vadd.f32 %v2039, %v2087
        %v2089 = vpop.f32.mrf.mxu0
        %v2090 = vadd.f32 %v2041, %v2089
        %2091 = vmatmul.bf16.gmra.mxu0 %v1316
        %v2092 = vpop.f32.mrf.mxu0
        %v2093 = vadd.f32 %v2044, %v2092
        %v2094 = vpop.f32.mrf.mxu0
        %v2095 = vadd.f32 %v2046, %v2094
        %2096 = vmatmul.bf16.gmra.mxu0 %v1320
        %v2097 = vpop.f32.mrf.mxu0
        %v2098 = vadd.f32 %v2049, %v2097
        %v2099 = vpop.f32.mrf.mxu0
        %v2100 = vadd.f32 %v2051, %v2099
        %2101 = vmatmul.bf16.gmra.mxu0 %v1324
        %v2102 = vpop.f32.mrf.mxu0
        %v2103 = vadd.f32 %v2054, %v2102
        %v2104 = vpop.f32.mrf.mxu0
        %v2105 = vadd.f32 %v2056, %v2104
        %2106 = vdwg.mxu0
        %v2107 = vmul.f32 %v1872, 0.2
        %v2108 = vmul.f32 %v2068, 0.2
        %v2109 = vmul.f32 %v1874, 0.2
        %v2110 = vmul.f32 %v2070, 0.2
        %v2111 = vmul.f32 %v1877, 0.2
        %v2112 = vmul.f32 %v2073, 0.2
        %v2113 = vmul.f32 %v1879, 0.2
        %v2114 = vmul.f32 %v2075, 0.2
        %v2115 = vmul.f32 %v1882, 0.2
        %v2116 = vmul.f32 %v2078, 0.2
        %v2117 = vmul.f32 %v1884, 0.2
        %v2118 = vmul.f32 %v2080, 0.2
        %v2119 = vmul.f32 %v1887, 0.2
        %v2120 = vmul.f32 %v2083, 0.2
        %v2121 = vmul.f32 %v1889, 0.2
        %v2122 = vmul.f32 %v2085, 0.2
        %v2123 = vmul.f32 %v1892, 0.2
        %v2124 = vmul.f32 %v2088, 0.2
        %v2125 = vmul.f32 %v1894, 0.2
        %v2126 = vmul.f32 %v2090, 0.2
        %v2127 = vmul.f32 %v1897, 0.2
        %v2128 = vmul.f32 %v2093, 0.2
        %v2129 = vmul.f32 %v1899, 0.2
        %v2130 = vmul.f32 %v2095, 0.2
        %v2131 = vmul.f32 %v1902, 0.2
        %v2132 = vmul.f32 %v2098, 0.2
        %v2133 = vmul.f32 %v1904, 0.2
        %v2134 = vmul.f32 %v2100, 0.2
        %v2135 = vmul.f32 %v1907, 0.2
        %v2136 = vmul.f32 %v2103, 0.2
        %v2137 = vmul.f32 %v1909, 0.2
        %v2138 = vmul.f32 %v2105, 0.2
        %v2139 = vmax.f32 %v1872, %v2107
        %v2140 = vmax.f32 %v2068, %v2108
        %v2141 = vmax.f32 %v1874, %v2109
        %v2142 = vmax.f32 %v2070, %v2110
        %v2143 = vmax.f32 %v1877, %v2111
        %v2144 = vmax.f32 %v2073, %v2112
        %v2145 = vmax.f32 %v1879, %v2113
        %v2146 = vmax.f32 %v2075, %v2114
        %v2147 = vmax.f32 %v1882, %v2115
        %v2148 = vmax.f32 %v2078, %v2116
        %v2149 = vmax.f32 %v1884, %v2117
        %v2150 = vmax.f32 %v2080, %v2118
        %v2151 = vmax.f32 %v1887, %v2119
        %v2152 = vmax.f32 %v2083, %v2120
        %v2153 = vmax.f32 %v1889, %v2121
        %v2154 = vmax.f32 %v2085, %v2122
        %v2155 = vmax.f32 %v1892, %v2123
        %v2156 = vmax.f32 %v2088, %v2124
        %v2157 = vmax.f32 %v1894, %v2125
        %v2158 = vmax.f32 %v2090, %v2126
        %v2159 = vmax.f32 %v1897, %v2127
        %v2160 = vmax.f32 %v2093, %v2128
        %v2161 = vmax.f32 %v1899, %v2129
        %v2162 = vmax.f32 %v2095, %v2130
        %v2163 = vmax.f32 %v1902, %v2131
        %v2164 = vmax.f32 %v2098, %v2132
        %v2165 = vmax.f32 %v1904, %v2133
        %v2166 = vmax.f32 %v2100, %v2134
        %v2167 = vmax.f32 %v1907, %v2135
        %v2168 = vmax.f32 %v2103, %v2136
        %v2169 = vmax.f32 %v1909, %v2137
        %v2170 = vmax.f32 %v2105, %v2138
        %v2171 = vld [vmem:[#allocation7] sm:$0x3]
        %v2173 = vperm.slane %v2171, 0
        %v2174 = vperm.slane %v2171, 1
        %v2177 = vmul.f32 %v2139, %v2173
        %v2178 = vmul.f32 %v2140, %v2174
        %v2179 = vmul.f32 %v2141, %v2173
        %v2180 = vmul.f32 %v2142, %v2174
        %v2181 = vmul.f32 %v2143, %v2173
        %v2182 = vmul.f32 %v2144, %v2174
        %v2183 = vmul.f32 %v2145, %v2173
        %v2184 = vmul.f32 %v2146, %v2174
        %v2185 = vmul.f32 %v2147, %v2173
        %v2186 = vmul.f32 %v2148, %v2174
        %v2187 = vmul.f32 %v2149, %v2173
        %v2188 = vmul.f32 %v2150, %v2174
        %v2189 = vmul.f32 %v2151, %v2173
        %v2190 = vmul.f32 %v2152, %v2174
        %v2191 = vmul.f32 %v2153, %v2173
        %v2192 = vmul.f32 %v2154, %v2174
        %v2193 = vmul.f32 %v2155, %v2173
        %v2194 = vmul.f32 %v2156, %v2174
        %v2195 = vmul.f32 %v2157, %v2173
        %v2196 = vmul.f32 %v2158, %v2174
        %v2197 = vmul.f32 %v2159, %v2173
        %v2198 = vmul.f32 %v2160, %v2174
        %v2199 = vmul.f32 %v2161, %v2173
        %v2200 = vmul.f32 %v2162, %v2174
        %v2201 = vmul.f32 %v2163, %v2173
        %v2202 = vmul.f32 %v2164, %v2174
        %v2203 = vmul.f32 %v2165, %v2173
        %v2204 = vmul.f32 %v2166, %v2174
        %v2205 = vmul.f32 %v2167, %v2173
        %v2206 = vmul.f32 %v2168, %v2174
        %v2207 = vmul.f32 %v2169, %v2173
        %v2208 = vmul.f32 %v2170, %v2174
        %v2209 = vadd.f32 %v2177, %v2178
        %2210 = vadd.xlane.f32.xlu0 %v2209
        %v2211 = vpop.xlane.xlu0 %2210
        %v2212 = vadd.f32 %v2179, %v2180
        %2213 = vadd.xlane.f32.xlu0 %v2212
        %v2214 = vpop.xlane.xlu0 %2213
        %v2215 = vadd.f32 %v2181, %v2182
        %2216 = vadd.xlane.f32.xlu0 %v2215
        %v2217 = vpop.xlane.xlu0 %2216
        %v2218 = vadd.f32 %v2183, %v2184
        %2219 = vadd.xlane.f32.xlu0 %v2218
        %v2220 = vpop.xlane.xlu0 %2219
        %v2221 = vadd.f32 %v2185, %v2186
        %2222 = vadd.xlane.f32.xlu0 %v2221
        %v2223 = vpop.xlane.xlu0 %2222
        %v2224 = vadd.f32 %v2187, %v2188
        %2225 = vadd.xlane.f32.xlu0 %v2224
        %v2226 = vpop.xlane.xlu0 %2225
        %v2227 = vadd.f32 %v2189, %v2190
        %2228 = vadd.xlane.f32.xlu0 %v2227
        %v2229 = vpop.xlane.xlu0 %2228
        %v2230 = vadd.f32 %v2191, %v2192
        %2231 = vadd.xlane.f32.xlu0 %v2230
        %v2232 = vpop.xlane.xlu0 %2231
        %v2233 = vadd.f32 %v2193, %v2194
        %2234 = vadd.xlane.f32.xlu0 %v2233
        %v2235 = vpop.xlane.xlu0 %2234
        %v2236 = vadd.f32 %v2195, %v2196
        %2237 = vadd.xlane.f32.xlu0 %v2236
        %v2238 = vpop.xlane.xlu0 %2237
        %v2239 = vadd.f32 %v2197, %v2198
        %2240 = vadd.xlane.f32.xlu0 %v2239
        %v2241 = vpop.xlane.xlu0 %2240
        %v2242 = vadd.f32 %v2199, %v2200
        %2243 = vadd.xlane.f32.xlu0 %v2242
        %v2244 = vpop.xlane.xlu0 %2243
        %v2245 = vadd.f32 %v2201, %v2202
        %2246 = vadd.xlane.f32.xlu0 %v2245
        %v2247 = vpop.xlane.xlu0 %2246
        %v2248 = vadd.f32 %v2203, %v2204
        %2249 = vadd.xlane.f32.xlu0 %v2248
        %v2250 = vpop.xlane.xlu0 %2249
        %v2251 = vadd.f32 %v2205, %v2206
        %2252 = vadd.xlane.f32.xlu0 %v2251
        %v2253 = vpop.xlane.xlu0 %2252
        %v2254 = vadd.f32 %v2207, %v2208
        %2255 = vadd.xlane.f32.xlu0 %v2254
        %v2256 = vpop.xlane.xlu0 %2255
        %v2257 = vld [vmem:[#allocation2] sm:$0x1]
        %v2259 = vperm.slane %v2257, 0
        %v2261 = vadd.f32 %v2211, %v2259
        %v2262 = vadd.f32 %v2214, %v2259
        %v2263 = vadd.f32 %v2217, %v2259
        %v2264 = vadd.f32 %v2220, %v2259
        %v2265 = vadd.f32 %v2223, %v2259
        %v2266 = vadd.f32 %v2226, %v2259
        %v2267 = vadd.f32 %v2229, %v2259
        %v2268 = vadd.f32 %v2232, %v2259
        %v2269 = vadd.f32 %v2235, %v2259
        %v2270 = vadd.f32 %v2238, %v2259
        %v2271 = vadd.f32 %v2241, %v2259
        %v2272 = vadd.f32 %v2244, %v2259
        %v2273 = vadd.f32 %v2247, %v2259
        %v2274 = vadd.f32 %v2250, %v2259
        %v2275 = vadd.f32 %v2253, %v2259
        %v2276 = vadd.f32 %v2256, %v2259
        %vm2277 = vcmask 7168
        %2278 = vst.msk [vmem:[%s329] sm:$0xff] %vm2277, %v2261
        %2279 = vst.msk [vmem:[%s329 + $0x8] sm:$0xff] %vm2277, %v2262
        %2280 = vst.msk [vmem:[%s329 + $0x10] sm:$0xff] %vm2277, %v2263
        %2281 = vst.msk [vmem:[%s329 + $0x18] sm:$0xff] %vm2277, %v2264
        %2282 = vst.msk [vmem:[%s329 + $0x20] sm:$0xff] %vm2277, %v2265
        %2283 = vst.msk [vmem:[%s329 + $0x28] sm:$0xff] %vm2277, %v2266
        %2284 = vst.msk [vmem:[%s329 + $0x30] sm:$0xff] %vm2277, %v2267
        %2285 = vst.msk [vmem:[%s329 + $0x38] sm:$0xff] %vm2277, %v2268
        %2286 = vst.msk [vmem:[%s329 + $0x40] sm:$0xff] %vm2277, %v2269
        %2287 = vst.msk [vmem:[%s329 + $0x48] sm:$0xff] %vm2277, %v2270
        %2288 = vst.msk [vmem:[%s329 + $0x50] sm:$0xff] %vm2277, %v2271
        %2289 = vst.msk [vmem:[%s329 + $0x58] sm:$0xff] %vm2277, %v2272
        %2290 = vst.msk [vmem:[%s329 + $0x60] sm:$0xff] %vm2277, %v2273
        %2291 = vst.msk [vmem:[%s329 + $0x68] sm:$0xff] %vm2277, %v2274
        %2292 = vst.msk [vmem:[%s329 + $0x70] sm:$0xff] %vm2277, %v2275
        %2293 = vst.msk [vmem:[%s329 + $0x78] sm:$0xff] %vm2277, %v2276
        %s2294 = smul.u32 16, %s22
        %p2295 = scmp.lt.s32.totalorder %s2294, 31
        %s2296 = scalar_select %p2295, %s2294, 31
        %s2297 = smul.addr %s2296, 8
        %s2298 = scalar_lea.vmem %s7, %s2297
        // Predicated region
        $region61: #{discriminator_forward.1} parent=47 // pred_check
          %p2299 = pneg %p192
        $region62: #{discriminator_forward.1} parent=47 // pred_check_branch
          %2301 = sbr.rel (%p2299) target = $region64
        $region63: #{discriminator_forward.1} parent=47 // pred_region
          %s2302 = smul.u32 16, %s22
        $region64: #{discriminator_forward.1} parent=47 // pred_fallthru
          _
      $region48: #{discriminator_forward.1} parent=5 // pred_fallthru
        _
      %p2303 = scmp.le.s32.totalorder 2, %s17
      // Predicated region
      $region65: #{discriminator_forward.1} parent=5 // pred_check
        %p2304 = pneg %p2303
      $region66: #{discriminator_forward.1} parent=5 // pred_check_branch
        %2306 = sbr.rel (%p2304) target = $region68
      $region67: #{discriminator_forward.1} parent=5 // pred_region
        %s2307 = ssub.s32 %s17, 2
        // Predicated region
        $region69: #{discriminator_forward.1} parent=67 // pred_check
          %p2308 = pneg %p198
        $region70: #{discriminator_forward.1} parent=67 // pred_check_branch
          %2310 = sbr.rel (%p2308) target = $region72
        $region71: #{discriminator_forward.1} parent=67 // pred_region
          %s2311 = smul.u32 16, %s23
          %p2312 = scmp.lt.s32.totalorder %s2311, 31
          %s2313 = scalar_select %p2312, %s2311, 31
          %s2314 = smul.addr %s2313, 8
          %s2315 = scalar_lea.vmem %s7, %s2314
        $region72: #{discriminator_forward.1} parent=67 // pred_fallthru
          _
      $region68: #{discriminator_forward.1} parent=5 // pred_fallthru
        _
    $region6: #{discriminator_forward.1} parent=1 // loop_footer
      %s21 = sadd.s32 1, %s17
    $region7: #{discriminator_forward.1} parent=1 // loop_footer_branch
      %16 = sbr.rel target = $region3
    $region8: #{discriminator_forward.1} parent=1 // loop_exit
      _
    %2316 = vsyncpa [#allocation4], 1
    %s2317 = scalar_lea.sflag [#allocation4], 1
    %2318 = vsyncpa %s2317, 1
    %2319 = vsyncpa [#allocation6], 1

</llo_original>
